<compile_context>
chip_gen: v7x
topology: tpu7x:2x2x1
jax: 0.10.0
libtpu: 0.0.40
codegen_flags: <defaults>
</compile_context>

<pallas_src>
import jax
import jax.numpy as jnp
import numpy as np
from jax import lax
from jax.experimental import pallas as pl
from jax.experimental.pallas import tpu as pltpu


# ----------------------------------------------------------------------------
# Kernel 1: single-layer GRU over the full sequence, fused with
#           gru_linear + sigmoid (the 'resched' / 'lstm' compute path).
# ----------------------------------------------------------------------------
def gru_forward_kernel(x_ref, h0_ref, wih_ref, whh_ref, bih_ref, bhh_ref,
                       wlin_ref, blin_ref, y_ref, hn_ref, gi_ref, h_all_ref):
    # x_ref:   (S*B, F)   bf16      h0_ref:  (B, Hp)    f32
    # wih_ref: (F, 3*Hp)  bf16      whh_ref: (Hp, 3*Hp) bf16   [gate order r,z,n]
    # bih_ref: (1, 3*Hp)  f32       bhh_ref: (1, 3*Hp)  f32
    # wlin_ref:(Hp, O)    bf16      blin_ref:(1, O)     f32
    # y_ref:   (S, B, O)  f32       hn_ref:  (B, H)     f32
    # gi_ref:  (S, B, 3*Hp) f32 scratch   h_all_ref: (S, B, Hp) f32 scratch
    S, B, O = y_ref.shape
    Hp = h0_ref.shape[1]
    H = hn_ref.shape[1]

    # (1) Hoisted input projection: one MXU matmul for all S timesteps.
    gi_all = jnp.dot(x_ref[...], wih_ref[...],
                     preferred_element_type=jnp.float32) + bih_ref[...]
    gi_ref[...] = gi_all.reshape(S, B, 3 * Hp)

    # Hoisted recurrent weight load and bias broadcast (not redone per step).
    whh = whh_ref[...]                                  # (Hp, 3Hp) bf16
    bhh = jnp.broadcast_to(bhh_ref[...], (B, 3 * Hp))   # (B, 3Hp) f32

    def step(t, h_prev):                                # h_prev: (B, Hp) f32
        gi = gi_ref[t]                                  # (B, 3Hp) f32
        gh = jnp.dot(h_prev.astype(whh.dtype), whh,
                     preferred_element_type=jnp.float32) + bhh
        # Each gate occupies a full 128-lane tile -> whole-vreg selects.
        r = jax.nn.sigmoid(gi[:, 0:Hp] + gh[:, 0:Hp])
        z = jax.nn.sigmoid(gi[:, Hp:2 * Hp] + gh[:, Hp:2 * Hp])
        n = jnp.tanh(gi[:, 2 * Hp:] + r * gh[:, 2 * Hp:])
        h_new = (1.0 - z) * n + z * h_prev
        h_all_ref[t] = h_new                            # lane-dense (B, 128) store
        return h_new

    h_final = lax.fori_loop(0, S, step, h0_ref[...], unroll=True)

    # (2) Deferred gru_linear + Sigmoid: one matmul + one store.
    h_flat = h_all_ref[...].reshape(S * B, Hp).astype(wlin_ref.dtype)
    y = jax.nn.sigmoid(jnp.dot(h_flat, wlin_ref[...],
                               preferred_element_type=jnp.float32)
                       + blin_ref[...])
    y_ref[...] = y.reshape(S, B, O).astype(y_ref.dtype)
    hn_ref[...] = h_final[:, :H].astype(hn_ref.dtype)


def _pad_gate_cols(w, H, Hp):
    """w: (K, 3H), gate order [r,z,n] along columns -> (K, 3*Hp), each gate
    zero-padded from H to Hp lanes so it owns whole 128-lane tiles."""
    K = w.shape[0]
    w3 = w.reshape(K, 3, H)
    w3 = jnp.pad(w3, ((0, 0), (0, 0), (0, Hp - H)))
    return w3.reshape(K, 3 * Hp)


def sc_gru_gru_path(x, h0, w_ih, w_hh, b_ih, b_hh, w_lin, b_lin):
    """x: (S, B, F); h0: (B, H).  Returns (y: (S, B, O), hn: (B, H))."""
    S, B, F = x.shape
    H = h0.shape[1]
    O = w_lin.shape[0]
    Hp = ((H + 127) // 128) * 128          # lane-align each GRU gate
    bf16 = jnp.bfloat16
    f32 = jnp.float32

    # bf16 MXU operands, lane-padded gate layout (built once, outside kernel).
    wih_p = _pad_gate_cols(w_ih.T.astype(f32), H, Hp).astype(bf16)       # (F, 3Hp)
    whh_p = jnp.pad(_pad_gate_cols(w_hh.T.astype(f32), H, Hp),
                    ((0, Hp - H), (0, 0))).astype(bf16)                  # (Hp, 3Hp)
    bih_p = _pad_gate_cols(b_ih.reshape(1, -1).astype(f32), H, Hp)       # (1, 3Hp)
    bhh_p = _pad_gate_cols(b_hh.reshape(1, -1).astype(f32), H, Hp)       # (1, 3Hp)
    wlin_p = jnp.pad(w_lin.T.astype(f32),
                     ((0, Hp - H), (0, 0))).astype(bf16)                 # (Hp, O)
    blin_p = b_lin.reshape(1, -1).astype(f32)                            # (1, O)
    h0_p = jnp.pad(h0.astype(f32), ((0, 0), (0, Hp - H)))                # (B, Hp)
    x_flat = x.reshape(S * B, F).astype(bf16)                            # (S*B, F)

    vmem = pl.BlockSpec(memory_space=pltpu.MemorySpace.VMEM)
    call = pl.pallas_call(
        gru_forward_kernel,
        out_shape=(jax.ShapeDtypeStruct((S, B, O), f32),
                   jax.ShapeDtypeStruct((B, H), f32)),
        in_specs=[vmem] * 8,
        out_specs=(vmem, vmem),
        scratch_shapes=[pltpu.VMEM((S, B, 3 * Hp), f32),   # hoisted Gi
                        pltpu.VMEM((S, B, Hp), f32)],      # stacked hidden states
    )
    # TODO(synk): at scale, chunk the sequence with a grid (carry h across
    # chunks), add a parallel batch/request axis for v7x's 2nd TensorCore, and
    # raise vmem_limit_bytes; whole-array VMEM residency is fine at toy sizes.
    return call(x_flat, h0_p, wih_p, whh_p, bih_p, bhh_p, wlin_p, blin_p)


# ----------------------------------------------------------------------------
# Kernel 2: injector MLP path (Linear->ReLU->Linear->ReLU) fused with
#           gru_linear + Sigmoid (train_mode='injector').
# ----------------------------------------------------------------------------
def injector_kernel(x_ref, w1_ref, b1_ref, w2_ref, b2_ref, wlin_ref, blin_ref,
                    y_ref):
    # x:(N,F) bf16; w1:(F,Hi) bf16 b1:(1,Hi) f32; w2:(Hi,HL) bf16 b2:(1,HL) f32;
    # wlin:(HL,O) bf16 blin:(1,O) f32; y:(N,O) f32
    h1 = jnp.maximum(
        jnp.dot(x_ref[...], w1_ref[...],
                preferred_element_type=jnp.float32) + b1_ref[...], 0.0)
    h2 = jnp.maximum(
        jnp.dot(h1.astype(w2_ref.dtype), w2_ref[...],
                preferred_element_type=jnp.float32) + b2_ref[...], 0.0)
    y = jax.nn.sigmoid(
        jnp.dot(h2.astype(wlin_ref.dtype), wlin_ref[...],
                preferred_element_type=jnp.float32) + blin_ref[...])
    y_ref[...] = y.astype(y_ref.dtype)


def sc_gru_injector_path(x, w1, b1, w2, b2, w_lin, b_lin):
    """x: (..., F) -> (..., O), applying injector MLP then gru_linear+sigmoid."""
    lead = x.shape[:-1]
    F = x.shape[-1]
    N = int(np.prod(lead)) if lead else 1
    O = w_lin.shape[0]
    bf16 = jnp.bfloat16
    f32 = jnp.float32
    x2d = x.reshape(N, F).astype(bf16)
    vmem = pl.BlockSpec(memory_space=pltpu.MemorySpace.VMEM)
    call = pl.pallas_call(
        injector_kernel,
        out_shape=jax.ShapeDtypeStruct((N, O), f32),
        in_specs=[vmem] * 7,
        out_specs=vmem,
    )
    # TODO(synk): at large N, grid over row tiles (dimension_semantics=
    # ("parallel",)) and emit a lane-dense output layout instead of (N, 3).
    y = call(x2d, w1.T.astype(bf16), b1.reshape(1, -1).astype(f32),
             w2.T.astype(bf16), b2.reshape(1, -1).astype(f32),
             w_lin.T.astype(bf16), b_lin.reshape(1, -1).astype(f32))
    return y.reshape(*lead, O)


# ----------------------------------------------------------------------------
# Plain-JAX references for correctness checking.  They mirror the kernels'
# numerics exactly (bf16 MXU operands, f32 accumulation, f32 gate math) so the
# tight tolerance remains valid even though the recurrence compounds error.
# ----------------------------------------------------------------------------
def ref_gru_path(x, h0, w_ih, w_hh, b_ih, b_hh, w_lin, b_lin):
    bf16 = jnp.bfloat16
    S, B, F = x.shape
    H = h0.shape[1]
    wih_t = w_ih.T.astype(bf16)
    whh_t = w_hh.T.astype(bf16)
    wlin_t = w_lin.T.astype(bf16)
    gi_all = (jnp.dot(x.reshape(S * B, F).astype(bf16), wih_t,
                      preferred_element_type=jnp.float32)
              + b_ih).reshape(S, B, 3 * H)
    h = h0
    hs = []
    for t in range(S):
        gi = gi_all[t]
        gh = jnp.dot(h.astype(bf16), whh_t,
                     preferred_element_type=jnp.float32) + b_hh
        r = jax.nn.sigmoid(gi[:, :H] + gh[:, :H])
        z = jax.nn.sigmoid(gi[:, H:2 * H] + gh[:, H:2 * H])
        n = jnp.tanh(gi[:, 2 * H:] + r * gh[:, 2 * H:])
        h = (1.0 - z) * n + z * h
        hs.append(h)
    h_all = jnp.stack(hs, axis=0)
    y = jax.nn.sigmoid(jnp.dot(h_all.reshape(S * B, H).astype(bf16), wlin_t,
                               preferred_element_type=jnp.float32) + b_lin)
    return y.reshape(S, B, -1), h


def ref_injector_path(x, w1, b1, w2, b2, w_lin, b_lin):
    bf16 = jnp.bfloat16
    h1 = jnp.maximum(
        jnp.dot(x.astype(bf16), w1.T.astype(bf16),
                preferred_element_type=jnp.float32) + b1, 0.0)
    h2 = jnp.maximum(
        jnp.dot(h1.astype(bf16), w2.T.astype(bf16),
                preferred_element_type=jnp.float32) + b2, 0.0)
    return jax.nn.sigmoid(
        jnp.dot(h2.astype(bf16), w_lin.T.astype(bf16),
                preferred_element_type=jnp.float32) + b_lin)


# ----------------------------------------------------------------------------
if __name__ == "__main__":
    # Small shapes consistent with SC_GRU.__init__
    in_features = 8
    hidden = 32
    hidden_injector = 40
    out_features = 3          # (start, duration, refr)
    gru_layers = 1            # injector path requires hidden*gru_layers == hidden
    batch = 2
    seq = 8

    key = jax.random.PRNGKey(0)
    ks = jax.random.split(key, 12)
    f32 = jnp.float32

    # GRU params (PyTorch nn.GRU layout, gate order [r, z, n]); normal_ init.
    w_ih = jax.random.normal(ks[0], (3 * hidden, in_features), f32)
    w_hh = jax.random.normal(ks[1], (3 * hidden, hidden), f32)
    b_ih = jax.random.normal(ks[2], (3 * hidden,), f32)
    b_hh = jax.random.normal(ks[3], (3 * hidden,), f32)
    # gru_linear
    w_lin = jax.random.normal(ks[4], (out_features, hidden), f32)
    b_lin = jax.random.normal(ks[5], (out_features,), f32)
    # injector: Linear(F, Hi) -> ReLU -> Linear(Hi, H*L) -> ReLU
    w_inj1 = jax.random.normal(ks[6], (hidden_injector, in_features), f32)
    b_inj1 = jax.random.normal(ks[7], (hidden_injector,), f32)
    w_inj2 = jax.random.normal(ks[8], (hidden * gru_layers, hidden_injector), f32)
    b_inj2 = jax.random.normal(ks[9], (hidden * gru_layers,), f32)

    # Input sequence and reset_states() hidden state.
    x = jax.random.normal(ks[10], (seq, batch, in_features), f32)
    h0 = jnp.zeros((gru_layers, batch, hidden), f32)[0]   # single layer

    # TODO(synk): gru_layers > 1 (stacked GRU) would be handled by chaining
    # kernel calls per layer; demo fixes gru_layers=1 (also required so that
    # injector output width matches gru_linear input, as in the PyTorch code).

    # --- GRU path (resched / 'lstm' training compute) ---
    y_gru, hn = sc_gru_gru_path(x, h0, w_ih, w_hh, b_ih, b_hh, w_lin, b_lin)
    y_gru = jax.block_until_ready(y_gru)
    hn = jax.block_until_ready(hn)

    # --- Injector path ('injector' training / non-resched compute) ---
    y_inj = sc_gru_injector_path(x, w_inj1, b_inj1, w_inj2, b_inj2,
                                 w_lin, b_lin)
    y_inj = jax.block_until_ready(y_inj)

    # Correctness vs plain-JAX references (same bf16-MXU / f32-acc numerics).
    y_ref, hn_ref = ref_gru_path(x, h0, w_ih, w_hh, b_ih, b_hh, w_lin, b_lin)
    yinj_ref = ref_injector_path(x, w_inj1, b_inj1, w_inj2, b_inj2,
                                 w_lin, b_lin)
    assert y_gru.shape == (seq, batch, out_features)
    assert hn.shape == (batch, hidden)
    assert y_inj.shape == (seq, batch, out_features)
    np.testing.assert_allclose(np.asarray(y_gru), np.asarray(y_ref),
                               rtol=2e-3, atol=2e-3)
    np.testing.assert_allclose(np.asarray(hn), np.asarray(hn_ref),
                               rtol=2e-3, atol=2e-3)
    np.testing.assert_allclose(np.asarray(y_inj), np.asarray(yinj_ref),
                               rtol=2e-3, atol=2e-3)

    print("KERNEL_OK")
</pallas_src>

<mosaic_0001>
module attributes {stable_mosaic.version = 11 : i64} {
  func.func @gru_forward_kernel(%arg0: memref<16x8xbf16, #tpu.memory_space<vmem>>, %arg1: memref<2x128xf32, #tpu.memory_space<vmem>>, %arg2: memref<8x384xbf16, #tpu.memory_space<vmem>>, %arg3: memref<128x384xbf16, #tpu.memory_space<vmem>>, %arg4: memref<1x384xf32, #tpu.memory_space<vmem>>, %arg5: memref<1x384xf32, #tpu.memory_space<vmem>>, %arg6: memref<128x3xbf16, #tpu.memory_space<vmem>>, %arg7: memref<1x3xf32, #tpu.memory_space<vmem>>, %arg8: memref<8x2x3xf32, #tpu.memory_space<vmem>>, %arg9: memref<2x32xf32, #tpu.memory_space<vmem>>, %arg10: memref<8x2x384xf32, #tpu.memory_space<vmem>>, %arg11: memref<8x2x128xf32, #tpu.memory_space<vmem>>) attributes {dimension_semantics = [], scalar_prefetch = 0 : i64, scratch_operands = 2 : i64, tpu.core_type = #tpu.core_type<tc>} {
    %c0 = arith.constant 0 : index
    %c0_0 = arith.constant 0 : index
    %0 = vector.load %arg0[%c0, %c0_0] : memref<16x8xbf16, #tpu.memory_space<vmem>>, vector<16x8xbf16>
    %c0_1 = arith.constant 0 : index
    %c0_2 = arith.constant 0 : index
    %1 = vector.load %arg2[%c0_1, %c0_2] : memref<8x384xbf16, #tpu.memory_space<vmem>>, vector<8x384xbf16>
    %cst = arith.constant dense<0.000000e+00> : vector<16x384xf32>
    %2 = tpu.matmul %0, %1, %cst {dimension_numbers = #tpu.dot_dimension_numbers<[1], [0], [0], [1], [0, 0, 1, 1], [], []>} : vector<16x8xbf16>, vector<8x384xbf16>, vector<16x384xf32> -> vector<16x384xf32>
    %c0_3 = arith.constant 0 : index
    %c0_4 = arith.constant 0 : index
    %3 = vector.load %arg4[%c0_3, %c0_4] : memref<1x384xf32, #tpu.memory_space<vmem>>, vector<1x384xf32>
    %4 = vector.broadcast %3 : vector<1x384xf32> to vector<16x384xf32>
    %5 = arith.addf %2, %4 : vector<16x384xf32>
    %6 = vector.shape_cast %5 : vector<16x384xf32> to vector<8x2x384xf32>
    %c0_5 = arith.constant 0 : index
    %c0_6 = arith.constant 0 : index
    %c0_7 = arith.constant 0 : index
    %7 = vector.load %arg10[%c0_5, %c0_6, %c0_7] : memref<8x2x384xf32, #tpu.memory_space<vmem>>, vector<8x2x384xf32>
    tpu.vector_store %arg10[%c0_5, %c0_6, %c0_7], %6 {strides = array<i32>} : memref<8x2x384xf32, #tpu.memory_space<vmem>>, vector<8x2x384xf32>,
    %c0_8 = arith.constant 0 : index
    %c0_9 = arith.constant 0 : index
    %8 = vector.load %arg3[%c0_8, %c0_9] : memref<128x384xbf16, #tpu.memory_space<vmem>>, vector<128x384xbf16>
    %c0_10 = arith.constant 0 : index
    %c0_11 = arith.constant 0 : index
    %9 = vector.load %arg5[%c0_10, %c0_11] : memref<1x384xf32, #tpu.memory_space<vmem>>, vector<1x384xf32>
    %10 = vector.shape_cast %9 : vector<1x384xf32> to vector<1x384xf32>
    %11 = vector.broadcast %10 : vector<1x384xf32> to vector<2x384xf32>
    %c0_12 = arith.constant 0 : index
    %c0_13 = arith.constant 0 : index
    %12 = vector.load %arg1[%c0_12, %c0_13] : memref<2x128xf32, #tpu.memory_space<vmem>>, vector<2x128xf32>
    %c0_i32 = arith.constant 0 : i32
    %13 = arith.index_cast %c0_i32 : i32 to index
    %c0_14 = arith.constant 0 : index
    %c0_15 = arith.constant 0 : index
    %14 = vector.load %arg10[%13, %c0_14, %c0_15] : memref<8x2x384xf32, #tpu.memory_space<vmem>>, vector<1x2x384xf32>
    %15 = vector.shape_cast %14 : vector<1x2x384xf32> to vector<2x384xf32>
    %16 = arith.truncf %12 : vector<2x128xf32> to vector<2x128xbf16>
    %cst_16 = arith.constant dense<0.000000e+00> : vector<2x384xf32>
    %17 = tpu.matmul %16, %8, %cst_16 {dimension_numbers = #tpu.dot_dimension_numbers<[1], [0], [0], [1], [0, 0, 1, 1], [], []>} : vector<2x128xbf16>, vector<128x384xbf16>, vector<2x384xf32> -> vector<2x384xf32>
    %18 = arith.addf %17, %11 : vector<2x384xf32>
    %19 = vector.extract_strided_slice %15 {offsets = [0, 0], sizes = [2, 128], strides = [1, 1]} : vector<2x384xf32> to vector<2x128xf32>
    %20 = vector.extract_strided_slice %18 {offsets = [0, 0], sizes = [2, 128], strides = [1, 1]} : vector<2x384xf32> to vector<2x128xf32>
    %21 = arith.addf %19, %20 : vector<2x128xf32>
    %22 = arith.negf %21 : vector<2x128xf32>
    %23 = math.exp %22 : vector<2x128xf32>
    %cst_17 = arith.constant 1.000000e+00 : f32
    %24 = vector.broadcast %cst_17 : f32 to vector<2x128xf32>
    %25 = arith.addf %24, %23 : vector<2x128xf32>
    %26 = arith.divf %24, %25 : vector<2x128xf32>
    %27 = vector.extract_strided_slice %15 {offsets = [0, 128], sizes = [2, 128], strides = [1, 1]} : vector<2x384xf32> to vector<2x128xf32>
    %28 = vector.extract_strided_slice %18 {offsets = [0, 128], sizes = [2, 128], strides = [1, 1]} : vector<2x384xf32> to vector<2x128xf32>
    %29 = arith.addf %27, %28 : vector<2x128xf32>
    %30 = arith.negf %29 : vector<2x128xf32>
    %31 = math.exp %30 : vector<2x128xf32>
    %cst_18 = arith.constant 1.000000e+00 : f32
    %32 = vector.broadcast %cst_18 : f32 to vector<2x128xf32>
    %33 = arith.addf %32, %31 : vector<2x128xf32>
    %34 = arith.divf %32, %33 : vector<2x128xf32>
    %35 = vector.extract_strided_slice %15 {offsets = [0, 256], sizes = [2, 128], strides = [1, 1]} : vector<2x384xf32> to vector<2x128xf32>
    %36 = vector.extract_strided_slice %18 {offsets = [0, 256], sizes = [2, 128], strides = [1, 1]} : vector<2x384xf32> to vector<2x128xf32>
    %37 = arith.mulf %26, %36 : vector<2x128xf32>
    %38 = arith.addf %35, %37 : vector<2x128xf32>
    %39 = math.tanh %38 : vector<2x128xf32>
    %cst_19 = arith.constant 1.000000e+00 : f32
    %40 = vector.broadcast %cst_19 : f32 to vector<2x128xf32>
    %41 = arith.subf %40, %34 : vector<2x128xf32>
    %42 = arith.mulf %41, %39 : vector<2x128xf32>
    %43 = arith.mulf %34, %12 : vector<2x128xf32>
    %44 = arith.addf %42, %43 : vector<2x128xf32>
    %45 = arith.index_cast %c0_i32 : i32 to index
    %c0_20 = arith.constant 0 : index
    %c0_21 = arith.constant 0 : index
    %46 = vector.load %arg11[%45, %c0_20, %c0_21] : memref<8x2x128xf32, #tpu.memory_space<vmem>>, vector<1x2x128xf32>
    %47 = vector.shape_cast %46 : vector<1x2x128xf32> to vector<2x128xf32>
    %48 = vector.shape_cast %44 : vector<2x128xf32> to vector<1x2x128xf32>
    tpu.vector_store %arg11[%45, %c0_20, %c0_21], %48 {strides = array<i32>} : memref<8x2x128xf32, #tpu.memory_space<vmem>>, vector<1x2x128xf32>,
    %c1_i32 = arith.constant 1 : i32
    %49 = arith.index_cast %c1_i32 : i32 to index
    %c0_22 = arith.constant 0 : index
    %c0_23 = arith.constant 0 : index
    %50 = vector.load %arg10[%49, %c0_22, %c0_23] : memref<8x2x384xf32, #tpu.memory_space<vmem>>, vector<1x2x384xf32>
    %51 = vector.shape_cast %50 : vector<1x2x384xf32> to vector<2x384xf32>
    %52 = arith.truncf %44 : vector<2x128xf32> to vector<2x128xbf16>
    %cst_24 = arith.constant dense<0.000000e+00> : vector<2x384xf32>
    %53 = tpu.matmul %52, %8, %cst_24 {dimension_numbers = #tpu.dot_dimension_numbers<[1], [0], [0], [1], [0, 0, 1, 1], [], []>} : vector<2x128xbf16>, vector<128x384xbf16>, vector<2x384xf32> -> vector<2x384xf32>
    %54 = arith.addf %53, %11 : vector<2x384xf32>
    %55 = vector.extract_strided_slice %51 {offsets = [0, 0], sizes = [2, 128], strides = [1, 1]} : vector<2x384xf32> to vector<2x128xf32>
    %56 = vector.extract_strided_slice %54 {offsets = [0, 0], sizes = [2, 128], strides = [1, 1]} : vector<2x384xf32> to vector<2x128xf32>
    %57 = arith.addf %55, %56 : vector<2x128xf32>
    %58 = arith.negf %57 : vector<2x128xf32>
    %59 = math.exp %58 : vector<2x128xf32>
    %cst_25 = arith.constant 1.000000e+00 : f32
    %60 = vector.broadcast %cst_25 : f32 to vector<2x128xf32>
    %61 = arith.addf %60, %59 : vector<2x128xf32>
    %62 = arith.divf %60, %61 : vector<2x128xf32>
    %63 = vector.extract_strided_slice %51 {offsets = [0, 128], sizes = [2, 128], strides = [1, 1]} : vector<2x384xf32> to vector<2x128xf32>
    %64 = vector.extract_strided_slice %54 {offsets = [0, 128], sizes = [2, 128], strides = [1, 1]} : vector<2x384xf32> to vector<2x128xf32>
    %65 = arith.addf %63, %64 : vector<2x128xf32>
    %66 = arith.negf %65 : vector<2x128xf32>
    %67 = math.exp %66 : vector<2x128xf32>
    %cst_26 = arith.constant 1.000000e+00 : f32
    %68 = vector.broadcast %cst_26 : f32 to vector<2x128xf32>
    %69 = arith.addf %68, %67 : vector<2x128xf32>
    %70 = arith.divf %68, %69 : vector<2x128xf32>
    %71 = vector.extract_strided_slice %51 {offsets = [0, 256], sizes = [2, 128], strides = [1, 1]} : vector<2x384xf32> to vector<2x128xf32>
    %72 = vector.extract_strided_slice %54 {offsets = [0, 256], sizes = [2, 128], strides = [1, 1]} : vector<2x384xf32> to vector<2x128xf32>
    %73 = arith.mulf %62, %72 : vector<2x128xf32>
    %74 = arith.addf %71, %73 : vector<2x128xf32>
    %75 = math.tanh %74 : vector<2x128xf32>
    %cst_27 = arith.constant 1.000000e+00 : f32
    %76 = vector.broadcast %cst_27 : f32 to vector<2x128xf32>
    %77 = arith.subf %76, %70 : vector<2x128xf32>
    %78 = arith.mulf %77, %75 : vector<2x128xf32>
    %79 = arith.mulf %70, %44 : vector<2x128xf32>
    %80 = arith.addf %78, %79 : vector<2x128xf32>
    %81 = arith.index_cast %c1_i32 : i32 to index
    %c0_28 = arith.constant 0 : index
    %c0_29 = arith.constant 0 : index
    %82 = vector.load %arg11[%81, %c0_28, %c0_29] : memref<8x2x128xf32, #tpu.memory_space<vmem>>, vector<1x2x128xf32>
    %83 = vector.shape_cast %82 : vector<1x2x128xf32> to vector<2x128xf32>
    %84 = vector.shape_cast %80 : vector<2x128xf32> to vector<1x2x128xf32>
    tpu.vector_store %arg11[%81, %c0_28, %c0_29], %84 {strides = array<i32>} : memref<8x2x128xf32, #tpu.memory_space<vmem>>, vector<1x2x128xf32>,
    %c2_i32 = arith.constant 2 : i32
    %85 = arith.index_cast %c2_i32 : i32 to index
    %c0_30 = arith.constant 0 : index
    %c0_31 = arith.constant 0 : index
    %86 = vector.load %arg10[%85, %c0_30, %c0_31] : memref<8x2x384xf32, #tpu.memory_space<vmem>>, vector<1x2x384xf32>
    %87 = vector.shape_cast %86 : vector<1x2x384xf32> to vector<2x384xf32>
    %88 = arith.truncf %80 : vector<2x128xf32> to vector<2x128xbf16>
    %cst_32 = arith.constant dense<0.000000e+00> : vector<2x384xf32>
    %89 = tpu.matmul %88, %8, %cst_32 {dimension_numbers = #tpu.dot_dimension_numbers<[1], [0], [0], [1], [0, 0, 1, 1], [], []>} : vector<2x128xbf16>, vector<128x384xbf16>, vector<2x384xf32> -> vector<2x384xf32>
    %90 = arith.addf %89, %11 : vector<2x384xf32>
    %91 = vector.extract_strided_slice %87 {offsets = [0, 0], sizes = [2, 128], strides = [1, 1]} : vector<2x384xf32> to vector<2x128xf32>
    %92 = vector.extract_strided_slice %90 {offsets = [0, 0], sizes = [2, 128], strides = [1, 1]} : vector<2x384xf32> to vector<2x128xf32>
    %93 = arith.addf %91, %92 : vector<2x128xf32>
    %94 = arith.negf %93 : vector<2x128xf32>
    %95 = math.exp %94 : vector<2x128xf32>
    %cst_33 = arith.constant 1.000000e+00 : f32
    %96 = vector.broadcast %cst_33 : f32 to vector<2x128xf32>
    %97 = arith.addf %96, %95 : vector<2x128xf32>
    %98 = arith.divf %96, %97 : vector<2x128xf32>
    %99 = vector.extract_strided_slice %87 {offsets = [0, 128], sizes = [2, 128], strides = [1, 1]} : vector<2x384xf32> to vector<2x128xf32>
    %100 = vector.extract_strided_slice %90 {offsets = [0, 128], sizes = [2, 128], strides = [1, 1]} : vector<2x384xf32> to vector<2x128xf32>
    %101 = arith.addf %99, %100 : vector<2x128xf32>
    %102 = arith.negf %101 : vector<2x128xf32>
    %103 = math.exp %102 : vector<2x128xf32>
    %cst_34 = arith.constant 1.000000e+00 : f32
    %104 = vector.broadcast %cst_34 : f32 to vector<2x128xf32>
    %105 = arith.addf %104, %103 : vector<2x128xf32>
    %106 = arith.divf %104, %105 : vector<2x128xf32>
    %107 = vector.extract_strided_slice %87 {offsets = [0, 256], sizes = [2, 128], strides = [1, 1]} : vector<2x384xf32> to vector<2x128xf32>
    %108 = vector.extract_strided_slice %90 {offsets = [0, 256], sizes = [2, 128], strides = [1, 1]} : vector<2x384xf32> to vector<2x128xf32>
    %109 = arith.mulf %98, %108 : vector<2x128xf32>
    %110 = arith.addf %107, %109 : vector<2x128xf32>
    %111 = math.tanh %110 : vector<2x128xf32>
    %cst_35 = arith.constant 1.000000e+00 : f32
    %112 = vector.broadcast %cst_35 : f32 to vector<2x128xf32>
    %113 = arith.subf %112, %106 : vector<2x128xf32>
    %114 = arith.mulf %113, %111 : vector<2x128xf32>
    %115 = arith.mulf %106, %80 : vector<2x128xf32>
    %116 = arith.addf %114, %115 : vector<2x128xf32>
    %117 = arith.index_cast %c2_i32 : i32 to index
    %c0_36 = arith.constant 0 : index
    %c0_37 = arith.constant 0 : index
    %118 = vector.load %arg11[%117, %c0_36, %c0_37] : memref<8x2x128xf32, #tpu.memory_space<vmem>>, vector<1x2x128xf32>
    %119 = vector.shape_cast %118 : vector<1x2x128xf32> to vector<2x128xf32>
    %120 = vector.shape_cast %116 : vector<2x128xf32> to vector<1x2x128xf32>
    tpu.vector_store %arg11[%117, %c0_36, %c0_37], %120 {strides = array<i32>} : memref<8x2x128xf32, #tpu.memory_space<vmem>>, vector<1x2x128xf32>,
    %c3_i32 = arith.constant 3 : i32
    %121 = arith.index_cast %c3_i32 : i32 to index
    %c0_38 = arith.constant 0 : index
    %c0_39 = arith.constant 0 : index
    %122 = vector.load %arg10[%121, %c0_38, %c0_39] : memref<8x2x384xf32, #tpu.memory_space<vmem>>, vector<1x2x384xf32>
    %123 = vector.shape_cast %122 : vector<1x2x384xf32> to vector<2x384xf32>
    %124 = arith.truncf %116 : vector<2x128xf32> to vector<2x128xbf16>
    %cst_40 = arith.constant dense<0.000000e+00> : vector<2x384xf32>
    %125 = tpu.matmul %124, %8, %cst_40 {dimension_numbers = #tpu.dot_dimension_numbers<[1], [0], [0], [1], [0, 0, 1, 1], [], []>} : vector<2x128xbf16>, vector<128x384xbf16>, vector<2x384xf32> -> vector<2x384xf32>
    %126 = arith.addf %125, %11 : vector<2x384xf32>
    %127 = vector.extract_strided_slice %123 {offsets = [0, 0], sizes = [2, 128], strides = [1, 1]} : vector<2x384xf32> to vector<2x128xf32>
    %128 = vector.extract_strided_slice %126 {offsets = [0, 0], sizes = [2, 128], strides = [1, 1]} : vector<2x384xf32> to vector<2x128xf32>
    %129 = arith.addf %127, %128 : vector<2x128xf32>
    %130 = arith.negf %129 : vector<2x128xf32>
    %131 = math.exp %130 : vector<2x128xf32>
    %cst_41 = arith.constant 1.000000e+00 : f32
    %132 = vector.broadcast %cst_41 : f32 to vector<2x128xf32>
    %133 = arith.addf %132, %131 : vector<2x128xf32>
    %134 = arith.divf %132, %133 : vector<2x128xf32>
    %135 = vector.extract_strided_slice %123 {offsets = [0, 128], sizes = [2, 128], strides = [1, 1]} : vector<2x384xf32> to vector<2x128xf32>
    %136 = vector.extract_strided_slice %126 {offsets = [0, 128], sizes = [2, 128], strides = [1, 1]} : vector<2x384xf32> to vector<2x128xf32>
    %137 = arith.addf %135, %136 : vector<2x128xf32>
    %138 = arith.negf %137 : vector<2x128xf32>
    %139 = math.exp %138 : vector<2x128xf32>
    %cst_42 = arith.constant 1.000000e+00 : f32
    %140 = vector.broadcast %cst_42 : f32 to vector<2x128xf32>
    %141 = arith.addf %140, %139 : vector<2x128xf32>
    %142 = arith.divf %140, %141 : vector<2x128xf32>
    %143 = vector.extract_strided_slice %123 {offsets = [0, 256], sizes = [2, 128], strides = [1, 1]} : vector<2x384xf32> to vector<2x128xf32>
    %144 = vector.extract_strided_slice %126 {offsets = [0, 256], sizes = [2, 128], strides = [1, 1]} : vector<2x384xf32> to vector<2x128xf32>
    %145 = arith.mulf %134, %144 : vector<2x128xf32>
    %146 = arith.addf %143, %145 : vector<2x128xf32>
    %147 = math.tanh %146 : vector<2x128xf32>
    %cst_43 = arith.constant 1.000000e+00 : f32
    %148 = vector.broadcast %cst_43 : f32 to vector<2x128xf32>
    %149 = arith.subf %148, %142 : vector<2x128xf32>
    %150 = arith.mulf %149, %147 : vector<2x128xf32>
    %151 = arith.mulf %142, %116 : vector<2x128xf32>
    %152 = arith.addf %150, %151 : vector<2x128xf32>
    %153 = arith.index_cast %c3_i32 : i32 to index
    %c0_44 = arith.constant 0 : index
    %c0_45 = arith.constant 0 : index
    %154 = vector.load %arg11[%153, %c0_44, %c0_45] : memref<8x2x128xf32, #tpu.memory_space<vmem>>, vector<1x2x128xf32>
    %155 = vector.shape_cast %154 : vector<1x2x128xf32> to vector<2x128xf32>
    %156 = vector.shape_cast %152 : vector<2x128xf32> to vector<1x2x128xf32>
    tpu.vector_store %arg11[%153, %c0_44, %c0_45], %156 {strides = array<i32>} : memref<8x2x128xf32, #tpu.memory_space<vmem>>, vector<1x2x128xf32>,
    %c4_i32 = arith.constant 4 : i32
    %157 = arith.index_cast %c4_i32 : i32 to index
    %c0_46 = arith.constant 0 : index
    %c0_47 = arith.constant 0 : index
    %158 = vector.load %arg10[%157, %c0_46, %c0_47] : memref<8x2x384xf32, #tpu.memory_space<vmem>>, vector<1x2x384xf32>
    %159 = vector.shape_cast %158 : vector<1x2x384xf32> to vector<2x384xf32>
    %160 = arith.truncf %152 : vector<2x128xf32> to vector<2x128xbf16>
    %cst_48 = arith.constant dense<0.000000e+00> : vector<2x384xf32>
    %161 = tpu.matmul %160, %8, %cst_48 {dimension_numbers = #tpu.dot_dimension_numbers<[1], [0], [0], [1], [0, 0, 1, 1], [], []>} : vector<2x128xbf16>, vector<128x384xbf16>, vector<2x384xf32> -> vector<2x384xf32>
    %162 = arith.addf %161, %11 : vector<2x384xf32>
    %163 = vector.extract_strided_slice %159 {offsets = [0, 0], sizes = [2, 128], strides = [1, 1]} : vector<2x384xf32> to vector<2x128xf32>
    %164 = vector.extract_strided_slice %162 {offsets = [0, 0], sizes = [2, 128], strides = [1, 1]} : vector<2x384xf32> to vector<2x128xf32>
    %165 = arith.addf %163, %164 : vector<2x128xf32>
    %166 = arith.negf %165 : vector<2x128xf32>
    %167 = math.exp %166 : vector<2x128xf32>
    %cst_49 = arith.constant 1.000000e+00 : f32
    %168 = vector.broadcast %cst_49 : f32 to vector<2x128xf32>
    %169 = arith.addf %168, %167 : vector<2x128xf32>
    %170 = arith.divf %168, %169 : vector<2x128xf32>
    %171 = vector.extract_strided_slice %159 {offsets = [0, 128], sizes = [2, 128], strides = [1, 1]} : vector<2x384xf32> to vector<2x128xf32>
    %172 = vector.extract_strided_slice %162 {offsets = [0, 128], sizes = [2, 128], strides = [1, 1]} : vector<2x384xf32> to vector<2x128xf32>
    %173 = arith.addf %171, %172 : vector<2x128xf32>
    %174 = arith.negf %173 : vector<2x128xf32>
    %175 = math.exp %174 : vector<2x128xf32>
    %cst_50 = arith.constant 1.000000e+00 : f32
    %176 = vector.broadcast %cst_50 : f32 to vector<2x128xf32>
    %177 = arith.addf %176, %175 : vector<2x128xf32>
    %178 = arith.divf %176, %177 : vector<2x128xf32>
    %179 = vector.extract_strided_slice %159 {offsets = [0, 256], sizes = [2, 128], strides = [1, 1]} : vector<2x384xf32> to vector<2x128xf32>
    %180 = vector.extract_strided_slice %162 {offsets = [0, 256], sizes = [2, 128], strides = [1, 1]} : vector<2x384xf32> to vector<2x128xf32>
    %181 = arith.mulf %170, %180 : vector<2x128xf32>
    %182 = arith.addf %179, %181 : vector<2x128xf32>
    %183 = math.tanh %182 : vector<2x128xf32>
    %cst_51 = arith.constant 1.000000e+00 : f32
    %184 = vector.broadcast %cst_51 : f32 to vector<2x128xf32>
    %185 = arith.subf %184, %178 : vector<2x128xf32>
    %186 = arith.mulf %185, %183 : vector<2x128xf32>
    %187 = arith.mulf %178, %152 : vector<2x128xf32>
    %188 = arith.addf %186, %187 : vector<2x128xf32>
    %189 = arith.index_cast %c4_i32 : i32 to index
    %c0_52 = arith.constant 0 : index
    %c0_53 = arith.constant 0 : index
    %190 = vector.load %arg11[%189, %c0_52, %c0_53] : memref<8x2x128xf32, #tpu.memory_space<vmem>>, vector<1x2x128xf32>
    %191 = vector.shape_cast %190 : vector<1x2x128xf32> to vector<2x128xf32>
    %192 = vector.shape_cast %188 : vector<2x128xf32> to vector<1x2x128xf32>
    tpu.vector_store %arg11[%189, %c0_52, %c0_53], %192 {strides = array<i32>} : memref<8x2x128xf32, #tpu.memory_space<vmem>>, vector<1x2x128xf32>,
    %c5_i32 = arith.constant 5 : i32
    %193 = arith.index_cast %c5_i32 : i32 to index
    %c0_54 = arith.constant 0 : index
    %c0_55 = arith.constant 0 : index
    %194 = vector.load %arg10[%193, %c0_54, %c0_55] : memref<8x2x384xf32, #tpu.memory_space<vmem>>, vector<1x2x384xf32>
    %195 = vector.shape_cast %194 : vector<1x2x384xf32> to vector<2x384xf32>
    %196 = arith.truncf %188 : vector<2x128xf32> to vector<2x128xbf16>
    %cst_56 = arith.constant dense<0.000000e+00> : vector<2x384xf32>
    %197 = tpu.matmul %196, %8, %cst_56 {dimension_numbers = #tpu.dot_dimension_numbers<[1], [0], [0], [1], [0, 0, 1, 1], [], []>} : vector<2x128xbf16>, vector<128x384xbf16>, vector<2x384xf32> -> vector<2x384xf32>
    %198 = arith.addf %197, %11 : vector<2x384xf32>
    %199 = vector.extract_strided_slice %195 {offsets = [0, 0], sizes = [2, 128], strides = [1, 1]} : vector<2x384xf32> to vector<2x128xf32>
    %200 = vector.extract_strided_slice %198 {offsets = [0, 0], sizes = [2, 128], strides = [1, 1]} : vector<2x384xf32> to vector<2x128xf32>
    %201 = arith.addf %199, %200 : vector<2x128xf32>
    %202 = arith.negf %201 : vector<2x128xf32>
    %203 = math.exp %202 : vector<2x128xf32>
    %cst_57 = arith.constant 1.000000e+00 : f32
    %204 = vector.broadcast %cst_57 : f32 to vector<2x128xf32>
    %205 = arith.addf %204, %203 : vector<2x128xf32>
    %206 = arith.divf %204, %205 : vector<2x128xf32>
    %207 = vector.extract_strided_slice %195 {offsets = [0, 128], sizes = [2, 128], strides = [1, 1]} : vector<2x384xf32> to vector<2x128xf32>
    %208 = vector.extract_strided_slice %198 {offsets = [0, 128], sizes = [2, 128], strides = [1, 1]} : vector<2x384xf32> to vector<2x128xf32>
    %209 = arith.addf %207, %208 : vector<2x128xf32>
    %210 = arith.negf %209 : vector<2x128xf32>
    %211 = math.exp %210 : vector<2x128xf32>
    %cst_58 = arith.constant 1.000000e+00 : f32
    %212 = vector.broadcast %cst_58 : f32 to vector<2x128xf32>
    %213 = arith.addf %212, %211 : vector<2x128xf32>
    %214 = arith.divf %212, %213 : vector<2x128xf32>
    %215 = vector.extract_strided_slice %195 {offsets = [0, 256], sizes = [2, 128], strides = [1, 1]} : vector<2x384xf32> to vector<2x128xf32>
    %216 = vector.extract_strided_slice %198 {offsets = [0, 256], sizes = [2, 128], strides = [1, 1]} : vector<2x384xf32> to vector<2x128xf32>
    %217 = arith.mulf %206, %216 : vector<2x128xf32>
    %218 = arith.addf %215, %217 : vector<2x128xf32>
    %219 = math.tanh %218 : vector<2x128xf32>
    %cst_59 = arith.constant 1.000000e+00 : f32
    %220 = vector.broadcast %cst_59 : f32 to vector<2x128xf32>
    %221 = arith.subf %220, %214 : vector<2x128xf32>
    %222 = arith.mulf %221, %219 : vector<2x128xf32>
    %223 = arith.mulf %214, %188 : vector<2x128xf32>
    %224 = arith.addf %222, %223 : vector<2x128xf32>
    %225 = arith.index_cast %c5_i32 : i32 to index
    %c0_60 = arith.constant 0 : index
    %c0_61 = arith.constant 0 : index
    %226 = vector.load %arg11[%225, %c0_60, %c0_61] : memref<8x2x128xf32, #tpu.memory_space<vmem>>, vector<1x2x128xf32>
    %227 = vector.shape_cast %226 : vector<1x2x128xf32> to vector<2x128xf32>
    %228 = vector.shape_cast %224 : vector<2x128xf32> to vector<1x2x128xf32>
    tpu.vector_store %arg11[%225, %c0_60, %c0_61], %228 {strides = array<i32>} : memref<8x2x128xf32, #tpu.memory_space<vmem>>, vector<1x2x128xf32>,
    %c6_i32 = arith.constant 6 : i32
    %229 = arith.index_cast %c6_i32 : i32 to index
    %c0_62 = arith.constant 0 : index
    %c0_63 = arith.constant 0 : index
    %230 = vector.load %arg10[%229, %c0_62, %c0_63] : memref<8x2x384xf32, #tpu.memory_space<vmem>>, vector<1x2x384xf32>
    %231 = vector.shape_cast %230 : vector<1x2x384xf32> to vector<2x384xf32>
    %232 = arith.truncf %224 : vector<2x128xf32> to vector<2x128xbf16>
    %cst_64 = arith.constant dense<0.000000e+00> : vector<2x384xf32>
    %233 = tpu.matmul %232, %8, %cst_64 {dimension_numbers = #tpu.dot_dimension_numbers<[1], [0], [0], [1], [0, 0, 1, 1], [], []>} : vector<2x128xbf16>, vector<128x384xbf16>, vector<2x384xf32> -> vector<2x384xf32>
    %234 = arith.addf %233, %11 : vector<2x384xf32>
    %235 = vector.extract_strided_slice %231 {offsets = [0, 0], sizes = [2, 128], strides = [1, 1]} : vector<2x384xf32> to vector<2x128xf32>
    %236 = vector.extract_strided_slice %234 {offsets = [0, 0], sizes = [2, 128], strides = [1, 1]} : vector<2x384xf32> to vector<2x128xf32>
    %237 = arith.addf %235, %236 : vector<2x128xf32>
    %238 = arith.negf %237 : vector<2x128xf32>
    %239 = math.exp %238 : vector<2x128xf32>
    %cst_65 = arith.constant 1.000000e+00 : f32
    %240 = vector.broadcast %cst_65 : f32 to vector<2x128xf32>
    %241 = arith.addf %240, %239 : vector<2x128xf32>
    %242 = arith.divf %240, %241 : vector<2x128xf32>
    %243 = vector.extract_strided_slice %231 {offsets = [0, 128], sizes = [2, 128], strides = [1, 1]} : vector<2x384xf32> to vector<2x128xf32>
    %244 = vector.extract_strided_slice %234 {offsets = [0, 128], sizes = [2, 128], strides = [1, 1]} : vector<2x384xf32> to vector<2x128xf32>
    %245 = arith.addf %243, %244 : vector<2x128xf32>
    %246 = arith.negf %245 : vector<2x128xf32>
    %247 = math.exp %246 : vector<2x128xf32>
    %cst_66 = arith.constant 1.000000e+00 : f32
    %248 = vector.broadcast %cst_66 : f32 to vector<2x128xf32>
    %249 = arith.addf %248, %247 : vector<2x128xf32>
    %250 = arith.divf %248, %249 : vector<2x128xf32>
    %251 = vector.extract_strided_slice %231 {offsets = [0, 256], sizes = [2, 128], strides = [1, 1]} : vector<2x384xf32> to vector<2x128xf32>
    %252 = vector.extract_strided_slice %234 {offsets = [0, 256], sizes = [2, 128], strides = [1, 1]} : vector<2x384xf32> to vector<2x128xf32>
    %253 = arith.mulf %242, %252 : vector<2x128xf32>
    %254 = arith.addf %251, %253 : vector<2x128xf32>
    %255 = math.tanh %254 : vector<2x128xf32>
    %cst_67 = arith.constant 1.000000e+00 : f32
    %256 = vector.broadcast %cst_67 : f32 to vector<2x128xf32>
    %257 = arith.subf %256, %250 : vector<2x128xf32>
    %258 = arith.mulf %257, %255 : vector<2x128xf32>
    %259 = arith.mulf %250, %224 : vector<2x128xf32>
    %260 = arith.addf %258, %259 : vector<2x128xf32>
    %261 = arith.index_cast %c6_i32 : i32 to index
    %c0_68 = arith.constant 0 : index
    %c0_69 = arith.constant 0 : index
    %262 = vector.load %arg11[%261, %c0_68, %c0_69] : memref<8x2x128xf32, #tpu.memory_space<vmem>>, vector<1x2x128xf32>
    %263 = vector.shape_cast %262 : vector<1x2x128xf32> to vector<2x128xf32>
    %264 = vector.shape_cast %260 : vector<2x128xf32> to vector<1x2x128xf32>
    tpu.vector_store %arg11[%261, %c0_68, %c0_69], %264 {strides = array<i32>} : memref<8x2x128xf32, #tpu.memory_space<vmem>>, vector<1x2x128xf32>,
    %c7_i32 = arith.constant 7 : i32
    %265 = arith.index_cast %c7_i32 : i32 to index
    %c0_70 = arith.constant 0 : index
    %c0_71 = arith.constant 0 : index
    %266 = vector.load %arg10[%265, %c0_70, %c0_71] : memref<8x2x384xf32, #tpu.memory_space<vmem>>, vector<1x2x384xf32>
    %267 = vector.shape_cast %266 : vector<1x2x384xf32> to vector<2x384xf32>
    %268 = arith.truncf %260 : vector<2x128xf32> to vector<2x128xbf16>
    %cst_72 = arith.constant dense<0.000000e+00> : vector<2x384xf32>
    %269 = tpu.matmul %268, %8, %cst_72 {dimension_numbers = #tpu.dot_dimension_numbers<[1], [0], [0], [1], [0, 0, 1, 1], [], []>} : vector<2x128xbf16>, vector<128x384xbf16>, vector<2x384xf32> -> vector<2x384xf32>
    %270 = arith.addf %269, %11 : vector<2x384xf32>
    %271 = vector.extract_strided_slice %267 {offsets = [0, 0], sizes = [2, 128], strides = [1, 1]} : vector<2x384xf32> to vector<2x128xf32>
    %272 = vector.extract_strided_slice %270 {offsets = [0, 0], sizes = [2, 128], strides = [1, 1]} : vector<2x384xf32> to vector<2x128xf32>
    %273 = arith.addf %271, %272 : vector<2x128xf32>
    %274 = arith.negf %273 : vector<2x128xf32>
    %275 = math.exp %274 : vector<2x128xf32>
    %cst_73 = arith.constant 1.000000e+00 : f32
    %276 = vector.broadcast %cst_73 : f32 to vector<2x128xf32>
    %277 = arith.addf %276, %275 : vector<2x128xf32>
    %278 = arith.divf %276, %277 : vector<2x128xf32>
    %279 = vector.extract_strided_slice %267 {offsets = [0, 128], sizes = [2, 128], strides = [1, 1]} : vector<2x384xf32> to vector<2x128xf32>
    %280 = vector.extract_strided_slice %270 {offsets = [0, 128], sizes = [2, 128], strides = [1, 1]} : vector<2x384xf32> to vector<2x128xf32>
    %281 = arith.addf %279, %280 : vector<2x128xf32>
    %282 = arith.negf %281 : vector<2x128xf32>
    %283 = math.exp %282 : vector<2x128xf32>
    %cst_74 = arith.constant 1.000000e+00 : f32
    %284 = vector.broadcast %cst_74 : f32 to vector<2x128xf32>
    %285 = arith.addf %284, %283 : vector<2x128xf32>
    %286 = arith.divf %284, %285 : vector<2x128xf32>
    %287 = vector.extract_strided_slice %267 {offsets = [0, 256], sizes = [2, 128], strides = [1, 1]} : vector<2x384xf32> to vector<2x128xf32>
    %288 = vector.extract_strided_slice %270 {offsets = [0, 256], sizes = [2, 128], strides = [1, 1]} : vector<2x384xf32> to vector<2x128xf32>
    %289 = arith.mulf %278, %288 : vector<2x128xf32>
    %290 = arith.addf %287, %289 : vector<2x128xf32>
    %291 = math.tanh %290 : vector<2x128xf32>
    %cst_75 = arith.constant 1.000000e+00 : f32
    %292 = vector.broadcast %cst_75 : f32 to vector<2x128xf32>
    %293 = arith.subf %292, %286 : vector<2x128xf32>
    %294 = arith.mulf %293, %291 : vector<2x128xf32>
    %295 = arith.mulf %286, %260 : vector<2x128xf32>
    %296 = arith.addf %294, %295 : vector<2x128xf32>
    %297 = arith.index_cast %c7_i32 : i32 to index
    %c0_76 = arith.constant 0 : index
    %c0_77 = arith.constant 0 : index
    %298 = vector.load %arg11[%297, %c0_76, %c0_77] : memref<8x2x128xf32, #tpu.memory_space<vmem>>, vector<1x2x128xf32>
    %299 = vector.shape_cast %298 : vector<1x2x128xf32> to vector<2x128xf32>
    %300 = vector.shape_cast %296 : vector<2x128xf32> to vector<1x2x128xf32>
    tpu.vector_store %arg11[%297, %c0_76, %c0_77], %300 {strides = array<i32>} : memref<8x2x128xf32, #tpu.memory_space<vmem>>, vector<1x2x128xf32>,
    %c8_i32 = arith.constant 8 : i32
    %c0_78 = arith.constant 0 : index
    %c0_79 = arith.constant 0 : index
    %c0_80 = arith.constant 0 : index
    %301 = vector.load %arg11[%c0_78, %c0_79, %c0_80] : memref<8x2x128xf32, #tpu.memory_space<vmem>>, vector<8x2x128xf32>
    %302 = vector.shape_cast %301 : vector<8x2x128xf32> to vector<16x128xf32>
    %303 = arith.truncf %302 : vector<16x128xf32> to vector<16x128xbf16>
    %c0_81 = arith.constant 0 : index
    %c0_82 = arith.constant 0 : index
    %304 = vector.load %arg6[%c0_81, %c0_82] : memref<128x3xbf16, #tpu.memory_space<vmem>>, vector<128x3xbf16>
    %cst_83 = arith.constant dense<0.000000e+00> : vector<16x3xf32>
    %305 = tpu.matmul %303, %304, %cst_83 {dimension_numbers = #tpu.dot_dimension_numbers<[1], [0], [0], [1], [0, 0, 1, 1], [], []>} : vector<16x128xbf16>, vector<128x3xbf16>, vector<16x3xf32> -> vector<16x3xf32>
    %c0_84 = arith.constant 0 : index
    %c0_85 = arith.constant 0 : index
    %306 = vector.load %arg7[%c0_84, %c0_85] : memref<1x3xf32, #tpu.memory_space<vmem>>, vector<1x3xf32>
    %307 = vector.broadcast %306 : vector<1x3xf32> to vector<16x3xf32>
    %308 = arith.addf %305, %307 : vector<16x3xf32>
    %309 = arith.negf %308 : vector<16x3xf32>
    %310 = math.exp %309 : vector<16x3xf32>
    %cst_86 = arith.constant 1.000000e+00 : f32
    %311 = vector.broadcast %cst_86 : f32 to vector<16x3xf32>
    %312 = arith.addf %311, %310 : vector<16x3xf32>
    %313 = arith.divf %311, %312 : vector<16x3xf32>
    %314 = vector.shape_cast %313 : vector<16x3xf32> to vector<8x2x3xf32>
    %c0_87 = arith.constant 0 : index
    %c0_88 = arith.constant 0 : index
    %c0_89 = arith.constant 0 : index
    %315 = vector.load %arg8[%c0_87, %c0_88, %c0_89] : memref<8x2x3xf32, #tpu.memory_space<vmem>>, vector<8x2x3xf32>
    tpu.vector_store %arg8[%c0_87, %c0_88, %c0_89], %314 {strides = array<i32>} : memref<8x2x3xf32, #tpu.memory_space<vmem>>, vector<8x2x3xf32>,
    %316 = vector.extract_strided_slice %296 {offsets = [0, 0], sizes = [2, 32], strides = [1, 1]} : vector<2x128xf32> to vector<2x32xf32>
    %c0_90 = arith.constant 0 : index
    %c0_91 = arith.constant 0 : index
    %317 = vector.load %arg9[%c0_90, %c0_91] : memref<2x32xf32, #tpu.memory_space<vmem>>, vector<2x32xf32>
    tpu.vector_store %arg9[%c0_90, %c0_91], %316 {strides = array<i32>} : memref<2x32xf32, #tpu.memory_space<vmem>>, vector<2x32xf32>,
    return
  }
}

</mosaic_0001>

<llo_original>
// kernel: tpu_custom_call.1
$region0: #{tpu_custom_call.1}
  #allocation0 [shape = 'u32[]', space=smem, size = 0x4, offset = 0x4, fixed_abs, tag = 'smem constant byte address 0x4 - core index']
  #allocation1 [shape = 'u32[144,128]{1,0:T(1,128)}', space=vmem, size = 0x12000, scoped, tag = 'internal scratch']
  #allocation2 [shape = 'f32[8,2,384]{2,1,0:T(2,128)}', space=vmem, size = 0x6000, scoped, tag = 'scratch operand']
  #allocation3 [shape = 'f32[8,2,128]{2,1,0:T(2,128)}', space=vmem, size = 0x2000, scoped, tag = 'scratch operand']
  %s0 = inlined_call_operand.vmem [shape: bf16[16,8], index: 0, kind: input, shape index: {}]
  %s1 = inlined_call_operand.vmem [shape: f32[2,128], index: 1, kind: input, shape index: {}]
  %s2 = inlined_call_operand.vmem [shape: bf16[8,384], index: 2, kind: input, shape index: {}]
  %s3 = inlined_call_operand.hbm [shape: bf16[128,384], index: 3, kind: input, shape index: {}]
  %s4 = inlined_call_operand.vmem [shape: f32[1,384], index: 4, kind: input, shape index: {}]
  %s5 = inlined_call_operand.vmem [shape: f32[1,384], index: 5, kind: input, shape index: {}]
  %s6 = inlined_call_operand.vmem [shape: bf16[128,3], index: 6, kind: input, shape index: {}]
  %s7 = inlined_call_operand.vmem [shape: f32[1,3], index: 7, kind: input, shape index: {}]
  %s8 = inlined_call_operand.vmem [shape: f32[8,2,3], index: 8, kind: output, shape index: {0}]
  %s9 = inlined_call_operand.hbm [shape: f32[2,32], index: 9, kind: output, shape index: {1}]
  %10 = xla_tuple %s8, %s9
  %s11 = sld [smem:[#allocation0]]
  $region54: #{tpu_custom_call.1} parent=0
    _
  %s13 = ssub.s32 1, %s11
  %s14 = scalar_select 0, %s13, %s11
  $region1: #{tpu_custom_call.1} parent=0
    #allocation4 [shape = 'u8[98304]{0}', space=vmem, size = 0x18000, scoped, tag = 'input window, operand 3, single buffered']
    #allocation5 [shape = 's32[1]{0}', space=sflag, size = 0x4, scoped, tag = 'scoped memory for tpu_custom_call.1']
    #allocation6 [shape = 's32[1]{0}', space=sflag, size = 0x4, scoped, tag = 'scoped memory for tpu_custom_call.1']
    #allocation7 [shape = 'u8[1024]{0}', space=vmem, size = 0x400, scoped, tag = 'output window, operand 1, single buffered']
    %15 = vsyncpa [#allocation5], 0
    %16 = vsyncpa [#allocation6], 0
    // Predicated region
    $region2: #{tpu_custom_call.1} parent=1 // pred_check
      _
    $region3: #{tpu_custom_call.1} parent=1 // pred_check_branch
      %18 = sbr.rel (0) target = $region5
    $region4: #{tpu_custom_call.1} parent=1 // pred_region
      _
    $region5: #{tpu_custom_call.1} parent=1 // pred_fallthru
      _
    // Predicated region
    $region6: #{tpu_custom_call.1} parent=1 // pred_check
      _
    $region7: #{tpu_custom_call.1} parent=1 // pred_check_branch
      %20 = sbr.rel (0) target = $region9
    $region8: #{tpu_custom_call.1} parent=1 // pred_region
      _
    $region9: #{tpu_custom_call.1} parent=1 // pred_fallthru
      _
    // Predicated region
    $region10: #{tpu_custom_call.1} parent=1 // pred_check
      _
    $region11: #{tpu_custom_call.1} parent=1 // pred_check_branch
      %22 = sbr.rel (0) target = $region13
    $region12: #{tpu_custom_call.1} parent=1 // pred_region
      _
    $region13: #{tpu_custom_call.1} parent=1 // pred_fallthru
      _
    // Predicated region
    $region14: #{tpu_custom_call.1} parent=1 // pred_check
      _
    $region15: #{tpu_custom_call.1} parent=1 // pred_check_branch
      %24 = sbr.rel (0) target = $region17
    $region16: #{tpu_custom_call.1} parent=1 // pred_region
      %s26 = ssub.s32 3072, 3072
      %27 = vsyncadd [#allocation5], %s26
      %s28 = sshll.u32 [#allocation4], 4
      %s29 = int_to_ptr.vmem [resolvable:$true] %s28
      %34 = dma.hbm_to_vmem [thread:$0]  %s3, 3072, %s29, [#allocation5], 192, 192, 12
    $region17: #{tpu_custom_call.1} parent=1 // pred_fallthru
      _
    // Predicated region
    $region18: #{tpu_custom_call.1} parent=1 // pred_check
      _
    $region19: #{tpu_custom_call.1} parent=1 // pred_check_branch
      %36 = sbr.rel (0) target = $region21
    $region20: #{tpu_custom_call.1} parent=1 // pred_region
      _
    $region21: #{tpu_custom_call.1} parent=1 // pred_fallthru
      _
    // Predicated region
    $region22: #{tpu_custom_call.1} parent=1 // pred_check
      _
    $region23: #{tpu_custom_call.1} parent=1 // pred_check_branch
      %38 = sbr.rel (0) target = $region25
    $region24: #{tpu_custom_call.1} parent=1 // pred_region
      _
    $region25: #{tpu_custom_call.1} parent=1 // pred_fallthru
      _
    // Predicated region
    $region26: #{tpu_custom_call.1} parent=1 // pred_check
      _
    $region27: #{tpu_custom_call.1} parent=1 // pred_check_branch
      %40 = sbr.rel (0) target = $region29
    $region28: #{tpu_custom_call.1} parent=1 // pred_region
      _
    $region29: #{tpu_custom_call.1} parent=1 // pred_fallthru
      _
    // Predicated region
    $region30: #{tpu_custom_call.1} parent=1 // pred_check
      _
    $region31: #{tpu_custom_call.1} parent=1 // pred_check_branch
      %42 = sbr.rel (0) target = $region33
    $region32: #{tpu_custom_call.1} parent=1 // pred_region
      _
    $region33: #{tpu_custom_call.1} parent=1 // pred_fallthru
      _
    // Predicated region
    $region34: #{tpu_custom_call.1} parent=1 // pred_check
      _
    $region35: #{tpu_custom_call.1} parent=1 // pred_check_branch
      %44 = sbr.rel (0) target = $region37
    $region36: #{tpu_custom_call.1} parent=1 // pred_region
      %45 = dma.done [#allocation5], 3072
    $region37: #{tpu_custom_call.1} parent=1 // pred_fallthru
      _
    %v47 = vld [vmem:[%s0] sm:$0xf]
    %v48 = vld [vmem:[%s0 + $0x4] sm:$0xf]
    %v49 = vld [vmem:[%s2] sm:$0xff]
    %v50 = vld [vmem:[%s2 + $0x8] sm:$0xf]
    %v51 = vld [vmem:[%s4] sm:$0x7]
    %v53 = vlaneseq
    %v54 = vshrl.u32 %v53, 7
    %v55 = vsub.s32 0, %v54
    %v56 = vrot.slane %v51, %v55
    %v57 = vlaneseq
    %v58 = vshrl.u32 %v57, 7
    %v59 = vsub.s32 1, %v58
    %v60 = vrot.slane %v51, %v59
    %v61 = vlaneseq
    %v62 = vshrl.u32 %v61, 7
    %v63 = vsub.s32 2, %v62
    %v64 = vrot.slane %v51, %v63
    %v70 = vunpack.c.l.b16 %v47
    %v71 = vunpack.c.l.b16 %v48
    %v72 = vpack.c.b16 %v71, %v70
    %v75 = vunpack.c.l.b16 %v49
    %v76 = vunpack.c.h.b16 %v49
    %v77 = vunpack.c.l.b16 %v50
    %v78 = vpack.c.b16 %v75, %v75
    %v79 = vpack.c.b16 %v76, %v76
    %v80 = vpack.c.b16 %v77, %v77
    %vm81 = vcmask 64512
    %v83 = vsel %vm81, %v72, 0
    %vm85 = vcmask 1043456
    %v87 = vsel %vm85, %v78, 0
    %v90 = vsel %vm85, %v79, 0
    %v93 = vsel %vm85, %v80, 0
    %95 = vmatprep.subr.bf16.mxu0 %v90
    %96 = vmatpush1.bf16.msra.mxu0 %v87
    %97 = vmatprep.subr.bf16.mxu0 0
    %98 = vmatpush1.bf16.msra.mxu0 0
    %99 = vmatprep.subr.bf16.mxu0 0
    %100 = vmatpush1.bf16.msra.mxu0 0
    %101 = vmatprep.subr.bf16.mxu0 0
    %102 = vmatpush1.bf16.msra.mxu0 0
    %103 = vmatprep.subr.bf16.mxu0 0
    %104 = vmatpush1.bf16.msra.mxu0 0
    %105 = vmatprep.subr.bf16.mxu0 0
    %106 = vmatpush1.bf16.msra.mxu0 0
    %107 = vmatprep.subr.bf16.mxu0 0
    %108 = vmatpush1.bf16.msra.mxu0 0
    %109 = vmatprep.subr.bf16.mxu0 0
    %110 = vmatpush1.bf16.msra.mxu0 0
    %111 = vmatprep.subr.bf16.mxu0 0
    %112 = vmatpush1.bf16.msra.mxu0 0
    %113 = vmatprep.subr.bf16.mxu0 0
    %114 = vmatpush1.bf16.msra.mxu0 0
    %115 = vmatprep.subr.bf16.mxu0 0
    %116 = vmatpush1.bf16.msra.mxu0 0
    %117 = vmatprep.subr.bf16.mxu0 0
    %118 = vmatpush1.bf16.msra.mxu0 0
    %119 = vmatprep.subr.bf16.mxu0 0
    %120 = vmatpush1.bf16.msra.mxu0 0
    %121 = vmatprep.subr.bf16.mxu0 0
    %122 = vmatpush1.bf16.msra.mxu0 0
    %123 = vmatprep.subr.bf16.mxu0 0
    %124 = vmatpush1.bf16.msra.mxu0 0
    %125 = vmatprep.subr.bf16.mxu0 0
    %126 = vmatpush1.bf16.msra.mxu0 0
    %127 = vmatprep.mubr.bf16.mxu0 0
    %128 = vmatmul.mubr.bf16.gmra.mrb[0].mxu0 %v83
    %v129 = vpop.f32.mrb[0].mxu0
    %v130 = vadd.f32 %v56, %v129
    %v131 = vpop.f32.mrb[0].mxu0
    %v132 = vadd.f32 %v60, %v131
    %v133 = vpop.f32.mrb[0].mxu0
    %v134 = vadd.f32 %v56, %v133
    %v135 = vpop.f32.mrb[0].mxu0
    %v136 = vadd.f32 %v60, %v135
    %137 = vdwg.mxu0
    %138 = vmatprep.subr.bf16.mxu0 0
    %139 = vmatpush1.bf16.msra.mxu0 %v93
    %140 = vmatprep.subr.bf16.mxu0 0
    %141 = vmatpush1.bf16.msra.mxu0 0
    %142 = vmatprep.subr.bf16.mxu0 0
    %143 = vmatpush1.bf16.msra.mxu0 0
    %144 = vmatprep.subr.bf16.mxu0 0
    %145 = vmatpush1.bf16.msra.mxu0 0
    %146 = vmatprep.subr.bf16.mxu0 0
    %147 = vmatpush1.bf16.msra.mxu0 0
    %148 = vmatprep.subr.bf16.mxu0 0
    %149 = vmatpush1.bf16.msra.mxu0 0
    %150 = vmatprep.subr.bf16.mxu0 0
    %151 = vmatpush1.bf16.msra.mxu0 0
    %152 = vmatprep.subr.bf16.mxu0 0
    %153 = vmatpush1.bf16.msra.mxu0 0
    %154 = vmatprep.subr.bf16.mxu0 0
    %155 = vmatpush1.bf16.msra.mxu0 0
    %156 = vmatprep.subr.bf16.mxu0 0
    %157 = vmatpush1.bf16.msra.mxu0 0
    %158 = vmatprep.subr.bf16.mxu0 0
    %159 = vmatpush1.bf16.msra.mxu0 0
    %160 = vmatprep.subr.bf16.mxu0 0
    %161 = vmatpush1.bf16.msra.mxu0 0
    %162 = vmatprep.subr.bf16.mxu0 0
    %163 = vmatpush1.bf16.msra.mxu0 0
    %164 = vmatprep.subr.bf16.mxu0 0
    %165 = vmatpush1.bf16.msra.mxu0 0
    %166 = vmatprep.subr.bf16.mxu0 0
    %167 = vmatpush1.bf16.msra.mxu0 0
    %168 = vmatprep.subr.bf16.mxu0 0
    %169 = vmatpush1.bf16.msra.mxu0 0
    %170 = vmatprep.mubr.bf16.mxu0 0
    %171 = vmatmul.mubr.bf16.gmra.mrb[0].mxu0 %v83
    %v172 = vpop.f32.mrb[0].mxu0
    %v173 = vadd.f32 %v64, %v172
    %v174 = vpop.f32.mrb[0].mxu0
    %v175 = vpop.f32.mrb[0].mxu0
    %v176 = vadd.f32 %v64, %v175
    %v177 = vpop.f32.mrb[0].mxu0
    %178 = vdwg.mxu0
    %v185 = vcombine.low %v130, %v132
    %v186 = vcombine.high %v130, %v132
    %v187 = vcombine.high %v173, %v173
    %v189 = vunpack.c.l.s4 1983009808
    %v190 = vunpack.c.0.s8 %v189
    %v191 = vlaneseq
    %v192 = vshrl.u32 %v191, 7
    %v193 = vsub.s32 %v190, %v192
    %v194 = vrot.slane %v185, %v193
    %v196 = vunpack.c.l.s4 1983009808
    %v197 = vunpack.c.0.s8 %v196
    %v198 = vlaneseq
    %v199 = vshrl.u32 %v198, 7
    %v200 = vsub.s32 %v197, %v199
    %v201 = vrot.slane %v186, %v200
    %v203 = vunpack.c.l.s4 1983009808
    %v204 = vunpack.c.0.s8 %v203
    %v205 = vlaneseq
    %v206 = vshrl.u32 %v205, 7
    %v207 = vsub.s32 %v204, %v206
    %v208 = vrot.slane %v173, %v207
    %v210 = vunpack.c.l.s4 1983009808
    %v211 = vunpack.c.0.s8 %v210
    %v212 = vlaneseq
    %v213 = vshrl.u32 %v212, 7
    %v214 = vsub.s32 %v211, %v213
    %v215 = vrot.slane %v187, %v214
    %v216 = vcombine.low %v194, %v208
    %v217 = vcombine.high %v194, %v208
    %v218 = vcombine.low %v201, %v215
    %v219 = vcombine.high %v201, %v215
    %v220 = vcombine.low %v134, %v136
    %v221 = vcombine.high %v134, %v136
    %v222 = vcombine.high %v176, %v176
    %v224 = vunpack.c.l.s4 1983009808
    %v225 = vunpack.c.0.s8 %v224
    %v226 = vlaneseq
    %v227 = vshrl.u32 %v226, 7
    %v228 = vsub.s32 %v225, %v227
    %v229 = vrot.slane %v220, %v228
    %v231 = vunpack.c.l.s4 1983009808
    %v232 = vunpack.c.0.s8 %v231
    %v233 = vlaneseq
    %v234 = vshrl.u32 %v233, 7
    %v235 = vsub.s32 %v232, %v234
    %v236 = vrot.slane %v221, %v235
    %v238 = vunpack.c.l.s4 1983009808
    %v239 = vunpack.c.0.s8 %v238
    %v240 = vlaneseq
    %v241 = vshrl.u32 %v240, 7
    %v242 = vsub.s32 %v239, %v241
    %v243 = vrot.slane %v176, %v242
    %v245 = vunpack.c.l.s4 1983009808
    %v246 = vunpack.c.0.s8 %v245
    %v247 = vlaneseq
    %v248 = vshrl.u32 %v247, 7
    %v249 = vsub.s32 %v246, %v248
    %v250 = vrot.slane %v222, %v249
    %v251 = vcombine.low %v229, %v243
    %v252 = vcombine.high %v229, %v243
    %v253 = vcombine.low %v236, %v250
    %v254 = vcombine.high %v236, %v250
    %263 = vst [vmem:[#allocation2] sm:$0x3f] %v216
    %264 = vst [vmem:[#allocation2 + $0x6] sm:$0x3f] %v217
    %265 = vst [vmem:[#allocation2 + $0xc] sm:$0x3f] %v218
    %266 = vst [vmem:[#allocation2 + $0x12] sm:$0x3f] %v219
    %267 = vst [vmem:[#allocation2 + $0x18] sm:$0x3f] %v251
    %268 = vst [vmem:[#allocation2 + $0x1e] sm:$0x3f] %v252
    %269 = vst [vmem:[#allocation2 + $0x24] sm:$0x3f] %v253
    %270 = vst [vmem:[#allocation2 + $0x2a] sm:$0x3f] %v254
    %v271 = vld [vmem:[#allocation4] sm:$0xff]
    %v272 = vld [vmem:[#allocation4 + $0x8] sm:$0xf]
    %v273 = vld [vmem:[#allocation4 + $0xc] sm:$0xff]
    %v274 = vld [vmem:[#allocation4 + $0x14] sm:$0xf]
    %v275 = vld [vmem:[#allocation4 + $0x18] sm:$0xff]
    %v276 = vld [vmem:[#allocation4 + $0x20] sm:$0xf]
    %v277 = vld [vmem:[#allocation4 + $0x24] sm:$0xff]
    %v278 = vld [vmem:[#allocation4 + $0x2c] sm:$0xf]
    %v279 = vld [vmem:[#allocation4 + $0x30] sm:$0xff]
    %v280 = vld [vmem:[#allocation4 + $0x38] sm:$0xf]
    %v281 = vld [vmem:[#allocation4 + $0x3c] sm:$0xff]
    %v282 = vld [vmem:[#allocation4 + $0x44] sm:$0xf]
    %v283 = vld [vmem:[#allocation4 + $0x48] sm:$0xff]
    %v284 = vld [vmem:[#allocation4 + $0x50] sm:$0xf]
    %v285 = vld [vmem:[#allocation4 + $0x54] sm:$0xff]
    %v286 = vld [vmem:[#allocation4 + $0x5c] sm:$0xf]
    %v287 = vld [vmem:[#allocation4 + $0x60] sm:$0xff]
    %v288 = vld [vmem:[#allocation4 + $0x68] sm:$0xf]
    %v289 = vld [vmem:[#allocation4 + $0x6c] sm:$0xff]
    %v290 = vld [vmem:[#allocation4 + $0x74] sm:$0xf]
    %v291 = vld [vmem:[#allocation4 + $0x78] sm:$0xff]
    %v292 = vld [vmem:[#allocation4 + $0x80] sm:$0xf]
    %v293 = vld [vmem:[#allocation4 + $0x84] sm:$0xff]
    %v294 = vld [vmem:[#allocation4 + $0x8c] sm:$0xf]
    %v295 = vld [vmem:[#allocation4 + $0x90] sm:$0xff]
    %v296 = vld [vmem:[#allocation4 + $0x98] sm:$0xf]
    %v297 = vld [vmem:[#allocation4 + $0x9c] sm:$0xff]
    %v298 = vld [vmem:[#allocation4 + $0xa4] sm:$0xf]
    %v299 = vld [vmem:[#allocation4 + $0xa8] sm:$0xff]
    %v300 = vld [vmem:[#allocation4 + $0xb0] sm:$0xf]
    %v301 = vld [vmem:[#allocation4 + $0xb4] sm:$0xff]
    %v302 = vld [vmem:[#allocation4 + $0xbc] sm:$0xf]
    %v303 = vld [vmem:[%s5] sm:$0x7]
    %v305 = vlaneseq
    %v306 = vshrl.u32 %v305, 7
    %v307 = vsub.s32 0, %v306
    %v308 = vrot.slane %v303, %v307
    %v309 = vlaneseq
    %v310 = vshrl.u32 %v309, 7
    %v311 = vsub.s32 1, %v310
    %v312 = vrot.slane %v303, %v311
    %v313 = vlaneseq
    %v314 = vshrl.u32 %v313, 7
    %v315 = vsub.s32 2, %v314
    %v316 = vrot.slane %v303, %v315
    %v320 = vld [vmem:[%s1] sm:$0x3]
    %v321 = vld [vmem:[#allocation2] sm:$0x3f]
    %v322 = vpack.c.bf16 %v320, %v320
    %v355 = vunpack.c.l.b16 %v271
    %v356 = vunpack.c.h.b16 %v271
    %v357 = vunpack.c.l.b16 %v272
    %v358 = vunpack.c.l.b16 %v273
    %v359 = vunpack.c.h.b16 %v273
    %v360 = vunpack.c.l.b16 %v274
    %v361 = vunpack.c.l.b16 %v275
    %v362 = vunpack.c.h.b16 %v275
    %v363 = vunpack.c.l.b16 %v276
    %v364 = vunpack.c.l.b16 %v277
    %v365 = vunpack.c.h.b16 %v277
    %v366 = vunpack.c.l.b16 %v278
    %v367 = vunpack.c.l.b16 %v279
    %v368 = vunpack.c.h.b16 %v279
    %v369 = vunpack.c.l.b16 %v280
    %v370 = vunpack.c.l.b16 %v281
    %v371 = vunpack.c.h.b16 %v281
    %v372 = vunpack.c.l.b16 %v282
    %v373 = vunpack.c.l.b16 %v283
    %v374 = vunpack.c.h.b16 %v283
    %v375 = vunpack.c.l.b16 %v284
    %v376 = vunpack.c.l.b16 %v285
    %v377 = vunpack.c.h.b16 %v285
    %v378 = vunpack.c.l.b16 %v286
    %v379 = vunpack.c.l.b16 %v287
    %v380 = vunpack.c.h.b16 %v287
    %v381 = vunpack.c.l.b16 %v288
    %v382 = vunpack.c.l.b16 %v289
    %v383 = vunpack.c.h.b16 %v289
    %v384 = vunpack.c.l.b16 %v290
    %v385 = vunpack.c.l.b16 %v291
    %v386 = vunpack.c.h.b16 %v291
    %v387 = vunpack.c.l.b16 %v292
    %v388 = vunpack.c.l.b16 %v293
    %v389 = vunpack.c.h.b16 %v293
    %v390 = vunpack.c.l.b16 %v294
    %v391 = vunpack.c.l.b16 %v295
    %v392 = vunpack.c.h.b16 %v295
    %v393 = vunpack.c.l.b16 %v296
    %v394 = vunpack.c.l.b16 %v297
    %v395 = vunpack.c.h.b16 %v297
    %v396 = vunpack.c.l.b16 %v298
    %v397 = vunpack.c.l.b16 %v299
    %v398 = vunpack.c.h.b16 %v299
    %v399 = vunpack.c.l.b16 %v300
    %v400 = vunpack.c.l.b16 %v301
    %v401 = vunpack.c.h.b16 %v301
    %v402 = vunpack.c.l.b16 %v302
    %v403 = vpack.c.b16 %v358, %v355
    %v404 = vpack.c.b16 %v359, %v356
    %v405 = vpack.c.b16 %v360, %v357
    %v406 = vpack.c.b16 %v364, %v361
    %v407 = vpack.c.b16 %v365, %v362
    %v408 = vpack.c.b16 %v366, %v363
    %v409 = vpack.c.b16 %v370, %v367
    %v410 = vpack.c.b16 %v371, %v368
    %v411 = vpack.c.b16 %v372, %v369
    %v412 = vpack.c.b16 %v376, %v373
    %v413 = vpack.c.b16 %v377, %v374
    %v414 = vpack.c.b16 %v378, %v375
    %v415 = vpack.c.b16 %v382, %v379
    %v416 = vpack.c.b16 %v383, %v380
    %v417 = vpack.c.b16 %v384, %v381
    %v418 = vpack.c.b16 %v388, %v385
    %v419 = vpack.c.b16 %v389, %v386
    %v420 = vpack.c.b16 %v390, %v387
    %v421 = vpack.c.b16 %v394, %v391
    %v422 = vpack.c.b16 %v395, %v392
    %v423 = vpack.c.b16 %v396, %v393
    %v424 = vpack.c.b16 %v400, %v397
    %v425 = vpack.c.b16 %v401, %v398
    %v426 = vpack.c.b16 %v402, %v399
    %451 = vmatprep.subr.bf16.mxu0 %v404
    %452 = vmatpush1.bf16.msra.mxu0 %v403
    %453 = vmatprep.subr.bf16.mxu0 %v407
    %454 = vmatpush1.bf16.msra.mxu0 %v406
    %455 = vmatprep.subr.bf16.mxu0 %v410
    %456 = vmatpush1.bf16.msra.mxu0 %v409
    %457 = vmatprep.subr.bf16.mxu0 %v413
    %458 = vmatpush1.bf16.msra.mxu0 %v412
    %459 = vmatprep.subr.bf16.mxu0 %v416
    %460 = vmatpush1.bf16.msra.mxu0 %v415
    %461 = vmatprep.subr.bf16.mxu0 %v419
    %462 = vmatpush1.bf16.msra.mxu0 %v418
    %463 = vmatprep.subr.bf16.mxu0 %v422
    %464 = vmatpush1.bf16.msra.mxu0 %v421
    %465 = vmatprep.subr.bf16.mxu0 %v425
    %466 = vmatpush1.bf16.msra.mxu0 %v424
    %467 = vmatprep.subr.bf16.mxu0 0
    %468 = vmatpush1.bf16.msra.mxu0 0
    %469 = vmatprep.subr.bf16.mxu0 0
    %470 = vmatpush1.bf16.msra.mxu0 0
    %471 = vmatprep.subr.bf16.mxu0 0
    %472 = vmatpush1.bf16.msra.mxu0 0
    %473 = vmatprep.subr.bf16.mxu0 0
    %474 = vmatpush1.bf16.msra.mxu0 0
    %475 = vmatprep.subr.bf16.mxu0 0
    %476 = vmatpush1.bf16.msra.mxu0 0
    %477 = vmatprep.subr.bf16.mxu0 0
    %478 = vmatpush1.bf16.msra.mxu0 0
    %479 = vmatprep.subr.bf16.mxu0 0
    %480 = vmatpush1.bf16.msra.mxu0 0
    %481 = vmatprep.subr.bf16.mxu0 0
    %482 = vmatpush1.bf16.msra.mxu0 0
    %483 = vmatprep.mubr.bf16.mxu0 0
    %484 = vmatmul.mubr.bf16.gmra.mrb[0].mxu0 %v322
    %v485 = vpop.f32.mrb[0].mxu0
    %v486 = vadd.f32 %v308, %v485
    %v487 = vpop.f32.mrb[0].mxu0
    %v488 = vadd.f32 %v312, %v487
    %v489 = vpop.f32.mrb[0].mxu0
    %v490 = vpop.f32.mrb[0].mxu0
    %491 = vdwg.mxu0
    %492 = vmatprep.subr.bf16.mxu0 0
    %493 = vmatpush1.bf16.msra.mxu0 %v405
    %494 = vmatprep.subr.bf16.mxu0 0
    %495 = vmatpush1.bf16.msra.mxu0 %v408
    %496 = vmatprep.subr.bf16.mxu0 0
    %497 = vmatpush1.bf16.msra.mxu0 %v411
    %498 = vmatprep.subr.bf16.mxu0 0
    %499 = vmatpush1.bf16.msra.mxu0 %v414
    %500 = vmatprep.subr.bf16.mxu0 0
    %501 = vmatpush1.bf16.msra.mxu0 %v417
    %502 = vmatprep.subr.bf16.mxu0 0
    %503 = vmatpush1.bf16.msra.mxu0 %v420
    %504 = vmatprep.subr.bf16.mxu0 0
    %505 = vmatpush1.bf16.msra.mxu0 %v423
    %506 = vmatprep.subr.bf16.mxu0 0
    %507 = vmatpush1.bf16.msra.mxu0 %v426
    %508 = vmatprep.subr.bf16.mxu0 0
    %509 = vmatpush1.bf16.msra.mxu0 0
    %510 = vmatprep.subr.bf16.mxu0 0
    %511 = vmatpush1.bf16.msra.mxu0 0
    %512 = vmatprep.subr.bf16.mxu0 0
    %513 = vmatpush1.bf16.msra.mxu0 0
    %514 = vmatprep.subr.bf16.mxu0 0
    %515 = vmatpush1.bf16.msra.mxu0 0
    %516 = vmatprep.subr.bf16.mxu0 0
    %517 = vmatpush1.bf16.msra.mxu0 0
    %518 = vmatprep.subr.bf16.mxu0 0
    %519 = vmatpush1.bf16.msra.mxu0 0
    %520 = vmatprep.subr.bf16.mxu0 0
    %521 = vmatpush1.bf16.msra.mxu0 0
    %522 = vmatprep.subr.bf16.mxu0 0
    %523 = vmatpush1.bf16.msra.mxu0 0
    %524 = vmatprep.mubr.bf16.mxu0 0
    %525 = vmatmul.mubr.bf16.gmra.mrb[0].mxu0 %v322
    %v526 = vpop.f32.mrb[0].mxu0
    %v527 = vadd.f32 %v316, %v526
    %v528 = vpop.f32.mrb[0].mxu0
    %v529 = vpop.f32.mrb[0].mxu0
    %v530 = vpop.f32.mrb[0].mxu0
    %531 = vdwg.mxu0
    %v532 = vadd.f32 %v321, %v486
    %v533 = vxor.u32 %v532, 2147483648
    %v534 = vmul.f32 %v533, 1.442695
    %v535 = vpow.pop %v534
    %v536 = vadd.f32 %v535, 1.0
    %v537 = vrcp.pop %v536
    %v538 = vmul.f32 1.0, %v537
    %v540 = vrot.slane %v321, 2
    %v542 = vadd.f32 %v540, %v488
    %v543 = vxor.u32 %v542, 2147483648
    %v544 = vmul.f32 %v543, 1.442695
    %v545 = vpow.pop %v544
    %v546 = vadd.f32 %v545, 1.0
    %v547 = vrcp.pop %v546
    %v548 = vmul.f32 1.0, %v547
    %v549 = vmul.f32 %v538, %v527
    %v550 = vrot.slane %v321, 4
    %v552 = vadd.f32 %v550, %v549
    %v553 = vtanh.pop %v552
    %v554 = vsub.f32 1.0, %v548
    %v555 = vmul.f32 %v554, %v553
    %v556 = vmul.f32 %v548, %v320
    %v557 = vadd.f32 %v555, %v556
    %558 = vst [vmem:[#allocation3] sm:$0x3] %v557
    %s559 = scalar_lea.vmem [#allocation2], 6
    %v560 = vld [vmem:[%s559] sm:$0x3f]
    %v561 = vpack.c.bf16 %v557, %v557
    %562 = vmatprep.subr.bf16.mxu0 %v404
    %563 = vmatpush1.bf16.msra.mxu0 %v403
    %564 = vmatprep.subr.bf16.mxu0 %v407
    %565 = vmatpush1.bf16.msra.mxu0 %v406
    %566 = vmatprep.subr.bf16.mxu0 %v410
    %567 = vmatpush1.bf16.msra.mxu0 %v409
    %568 = vmatprep.subr.bf16.mxu0 %v413
    %569 = vmatpush1.bf16.msra.mxu0 %v412
    %570 = vmatprep.subr.bf16.mxu0 %v416
    %571 = vmatpush1.bf16.msra.mxu0 %v415
    %572 = vmatprep.subr.bf16.mxu0 %v419
    %573 = vmatpush1.bf16.msra.mxu0 %v418
    %574 = vmatprep.subr.bf16.mxu0 %v422
    %575 = vmatpush1.bf16.msra.mxu0 %v421
    %576 = vmatprep.subr.bf16.mxu0 %v425
    %577 = vmatpush1.bf16.msra.mxu0 %v424
    %578 = vmatprep.subr.bf16.mxu0 0
    %579 = vmatpush1.bf16.msra.mxu0 0
    %580 = vmatprep.subr.bf16.mxu0 0
    %581 = vmatpush1.bf16.msra.mxu0 0
    %582 = vmatprep.subr.bf16.mxu0 0
    %583 = vmatpush1.bf16.msra.mxu0 0
    %584 = vmatprep.subr.bf16.mxu0 0
    %585 = vmatpush1.bf16.msra.mxu0 0
    %586 = vmatprep.subr.bf16.mxu0 0
    %587 = vmatpush1.bf16.msra.mxu0 0
    %588 = vmatprep.subr.bf16.mxu0 0
    %589 = vmatpush1.bf16.msra.mxu0 0
    %590 = vmatprep.subr.bf16.mxu0 0
    %591 = vmatpush1.bf16.msra.mxu0 0
    %592 = vmatprep.subr.bf16.mxu0 0
    %593 = vmatpush1.bf16.msra.mxu0 0
    %594 = vmatprep.mubr.bf16.mxu0 0
    %595 = vmatmul.mubr.bf16.gmra.mrb[0].mxu0 %v561
    %v596 = vpop.f32.mrb[0].mxu0
    %v597 = vadd.f32 %v308, %v596
    %v598 = vpop.f32.mrb[0].mxu0
    %v599 = vadd.f32 %v312, %v598
    %v600 = vpop.f32.mrb[0].mxu0
    %v601 = vpop.f32.mrb[0].mxu0
    %602 = vdwg.mxu0
    %603 = vmatprep.subr.bf16.mxu0 0
    %604 = vmatpush1.bf16.msra.mxu0 %v405
    %605 = vmatprep.subr.bf16.mxu0 0
    %606 = vmatpush1.bf16.msra.mxu0 %v408
    %607 = vmatprep.subr.bf16.mxu0 0
    %608 = vmatpush1.bf16.msra.mxu0 %v411
    %609 = vmatprep.subr.bf16.mxu0 0
    %610 = vmatpush1.bf16.msra.mxu0 %v414
    %611 = vmatprep.subr.bf16.mxu0 0
    %612 = vmatpush1.bf16.msra.mxu0 %v417
    %613 = vmatprep.subr.bf16.mxu0 0
    %614 = vmatpush1.bf16.msra.mxu0 %v420
    %615 = vmatprep.subr.bf16.mxu0 0
    %616 = vmatpush1.bf16.msra.mxu0 %v423
    %617 = vmatprep.subr.bf16.mxu0 0
    %618 = vmatpush1.bf16.msra.mxu0 %v426
    %619 = vmatprep.subr.bf16.mxu0 0
    %620 = vmatpush1.bf16.msra.mxu0 0
    %621 = vmatprep.subr.bf16.mxu0 0
    %622 = vmatpush1.bf16.msra.mxu0 0
    %623 = vmatprep.subr.bf16.mxu0 0
    %624 = vmatpush1.bf16.msra.mxu0 0
    %625 = vmatprep.subr.bf16.mxu0 0
    %626 = vmatpush1.bf16.msra.mxu0 0
    %627 = vmatprep.subr.bf16.mxu0 0
    %628 = vmatpush1.bf16.msra.mxu0 0
    %629 = vmatprep.subr.bf16.mxu0 0
    %630 = vmatpush1.bf16.msra.mxu0 0
    %631 = vmatprep.subr.bf16.mxu0 0
    %632 = vmatpush1.bf16.msra.mxu0 0
    %633 = vmatprep.subr.bf16.mxu0 0
    %634 = vmatpush1.bf16.msra.mxu0 0
    %635 = vmatprep.mubr.bf16.mxu0 0
    %636 = vmatmul.mubr.bf16.gmra.mrb[0].mxu0 %v561
    %v637 = vpop.f32.mrb[0].mxu0
    %v638 = vadd.f32 %v316, %v637
    %v639 = vpop.f32.mrb[0].mxu0
    %v640 = vpop.f32.mrb[0].mxu0
    %v641 = vpop.f32.mrb[0].mxu0
    %642 = vdwg.mxu0
    %v643 = vadd.f32 %v560, %v597
    %v644 = vxor.u32 %v643, 2147483648
    %v645 = vmul.f32 %v644, 1.442695
    %v646 = vpow.pop %v645
    %v647 = vadd.f32 %v646, 1.0
    %v648 = vrcp.pop %v647
    %v649 = vmul.f32 1.0, %v648
    %v651 = vrot.slane %v560, 2
    %v653 = vadd.f32 %v651, %v599
    %v654 = vxor.u32 %v653, 2147483648
    %v655 = vmul.f32 %v654, 1.442695
    %v656 = vpow.pop %v655
    %v657 = vadd.f32 %v656, 1.0
    %v658 = vrcp.pop %v657
    %v659 = vmul.f32 1.0, %v658
    %v660 = vmul.f32 %v649, %v638
    %v661 = vrot.slane %v560, 4
    %v663 = vadd.f32 %v661, %v660
    %v664 = vtanh.pop %v663
    %v665 = vsub.f32 1.0, %v659
    %v666 = vmul.f32 %v665, %v664
    %v667 = vmul.f32 %v659, %v557
    %v668 = vadd.f32 %v666, %v667
    %s669 = scalar_lea.vmem [#allocation3], 2
    %670 = vst [vmem:[%s669] sm:$0x3] %v668
    %s671 = scalar_lea.vmem [#allocation2], 12
    %v672 = vld [vmem:[%s671] sm:$0x3f]
    %v673 = vpack.c.bf16 %v668, %v668
    %674 = vmatprep.subr.bf16.mxu0 %v404
    %675 = vmatpush1.bf16.msra.mxu0 %v403
    %676 = vmatprep.subr.bf16.mxu0 %v407
    %677 = vmatpush1.bf16.msra.mxu0 %v406
    %678 = vmatprep.subr.bf16.mxu0 %v410
    %679 = vmatpush1.bf16.msra.mxu0 %v409
    %680 = vmatprep.subr.bf16.mxu0 %v413
    %681 = vmatpush1.bf16.msra.mxu0 %v412
    %682 = vmatprep.subr.bf16.mxu0 %v416
    %683 = vmatpush1.bf16.msra.mxu0 %v415
    %684 = vmatprep.subr.bf16.mxu0 %v419
    %685 = vmatpush1.bf16.msra.mxu0 %v418
    %686 = vmatprep.subr.bf16.mxu0 %v422
    %687 = vmatpush1.bf16.msra.mxu0 %v421
    %688 = vmatprep.subr.bf16.mxu0 %v425
    %689 = vmatpush1.bf16.msra.mxu0 %v424
    %690 = vmatprep.subr.bf16.mxu0 0
    %691 = vmatpush1.bf16.msra.mxu0 0
    %692 = vmatprep.subr.bf16.mxu0 0
    %693 = vmatpush1.bf16.msra.mxu0 0
    %694 = vmatprep.subr.bf16.mxu0 0
    %695 = vmatpush1.bf16.msra.mxu0 0
    %696 = vmatprep.subr.bf16.mxu0 0
    %697 = vmatpush1.bf16.msra.mxu0 0
    %698 = vmatprep.subr.bf16.mxu0 0
    %699 = vmatpush1.bf16.msra.mxu0 0
    %700 = vmatprep.subr.bf16.mxu0 0
    %701 = vmatpush1.bf16.msra.mxu0 0
    %702 = vmatprep.subr.bf16.mxu0 0
    %703 = vmatpush1.bf16.msra.mxu0 0
    %704 = vmatprep.subr.bf16.mxu0 0
    %705 = vmatpush1.bf16.msra.mxu0 0
    %706 = vmatprep.mubr.bf16.mxu0 0
    %707 = vmatmul.mubr.bf16.gmra.mrb[0].mxu0 %v673
    %v708 = vpop.f32.mrb[0].mxu0
    %v709 = vadd.f32 %v308, %v708
    %v710 = vpop.f32.mrb[0].mxu0
    %v711 = vadd.f32 %v312, %v710
    %v712 = vpop.f32.mrb[0].mxu0
    %v713 = vpop.f32.mrb[0].mxu0
    %714 = vdwg.mxu0
    %715 = vmatprep.subr.bf16.mxu0 0
    %716 = vmatpush1.bf16.msra.mxu0 %v405
    %717 = vmatprep.subr.bf16.mxu0 0
    %718 = vmatpush1.bf16.msra.mxu0 %v408
    %719 = vmatprep.subr.bf16.mxu0 0
    %720 = vmatpush1.bf16.msra.mxu0 %v411
    %721 = vmatprep.subr.bf16.mxu0 0
    %722 = vmatpush1.bf16.msra.mxu0 %v414
    %723 = vmatprep.subr.bf16.mxu0 0
    %724 = vmatpush1.bf16.msra.mxu0 %v417
    %725 = vmatprep.subr.bf16.mxu0 0
    %726 = vmatpush1.bf16.msra.mxu0 %v420
    %727 = vmatprep.subr.bf16.mxu0 0
    %728 = vmatpush1.bf16.msra.mxu0 %v423
    %729 = vmatprep.subr.bf16.mxu0 0
    %730 = vmatpush1.bf16.msra.mxu0 %v426
    %731 = vmatprep.subr.bf16.mxu0 0
    %732 = vmatpush1.bf16.msra.mxu0 0
    %733 = vmatprep.subr.bf16.mxu0 0
    %734 = vmatpush1.bf16.msra.mxu0 0
    %735 = vmatprep.subr.bf16.mxu0 0
    %736 = vmatpush1.bf16.msra.mxu0 0
    %737 = vmatprep.subr.bf16.mxu0 0
    %738 = vmatpush1.bf16.msra.mxu0 0
    %739 = vmatprep.subr.bf16.mxu0 0
    %740 = vmatpush1.bf16.msra.mxu0 0
    %741 = vmatprep.subr.bf16.mxu0 0
    %742 = vmatpush1.bf16.msra.mxu0 0
    %743 = vmatprep.subr.bf16.mxu0 0
    %744 = vmatpush1.bf16.msra.mxu0 0
    %745 = vmatprep.subr.bf16.mxu0 0
    %746 = vmatpush1.bf16.msra.mxu0 0
    %747 = vmatprep.mubr.bf16.mxu0 0
    %748 = vmatmul.mubr.bf16.gmra.mrb[0].mxu0 %v673
    %v749 = vpop.f32.mrb[0].mxu0
    %v750 = vadd.f32 %v316, %v749
    %v751 = vpop.f32.mrb[0].mxu0
    %v752 = vpop.f32.mrb[0].mxu0
    %v753 = vpop.f32.mrb[0].mxu0
    %754 = vdwg.mxu0
    %v755 = vadd.f32 %v672, %v709
    %v756 = vxor.u32 %v755, 2147483648
    %v757 = vmul.f32 %v756, 1.442695
    %v758 = vpow.pop %v757
    %v759 = vadd.f32 %v758, 1.0
    %v760 = vrcp.pop %v759
    %v761 = vmul.f32 1.0, %v760
    %v763 = vrot.slane %v672, 2
    %v765 = vadd.f32 %v763, %v711
    %v766 = vxor.u32 %v765, 2147483648
    %v767 = vmul.f32 %v766, 1.442695
    %v768 = vpow.pop %v767
    %v769 = vadd.f32 %v768, 1.0
    %v770 = vrcp.pop %v769
    %v771 = vmul.f32 1.0, %v770
    %v772 = vmul.f32 %v761, %v750
    %v773 = vrot.slane %v672, 4
    %v775 = vadd.f32 %v773, %v772
    %v776 = vtanh.pop %v775
    %v777 = vsub.f32 1.0, %v771
    %v778 = vmul.f32 %v777, %v776
    %v779 = vmul.f32 %v771, %v668
    %v780 = vadd.f32 %v778, %v779
    %s781 = scalar_lea.vmem [#allocation3], 4
    %782 = vst [vmem:[%s781] sm:$0x3] %v780
    %s783 = scalar_lea.vmem [#allocation2], 18
    %v784 = vld [vmem:[%s783] sm:$0x3f]
    %v785 = vpack.c.bf16 %v780, %v780
    %786 = vmatprep.subr.bf16.mxu0 %v404
    %787 = vmatpush1.bf16.msra.mxu0 %v403
    %788 = vmatprep.subr.bf16.mxu0 %v407
    %789 = vmatpush1.bf16.msra.mxu0 %v406
    %790 = vmatprep.subr.bf16.mxu0 %v410
    %791 = vmatpush1.bf16.msra.mxu0 %v409
    %792 = vmatprep.subr.bf16.mxu0 %v413
    %793 = vmatpush1.bf16.msra.mxu0 %v412
    %794 = vmatprep.subr.bf16.mxu0 %v416
    %795 = vmatpush1.bf16.msra.mxu0 %v415
    %796 = vmatprep.subr.bf16.mxu0 %v419
    %797 = vmatpush1.bf16.msra.mxu0 %v418
    %798 = vmatprep.subr.bf16.mxu0 %v422
    %799 = vmatpush1.bf16.msra.mxu0 %v421
    %800 = vmatprep.subr.bf16.mxu0 %v425
    %801 = vmatpush1.bf16.msra.mxu0 %v424
    %802 = vmatprep.subr.bf16.mxu0 0
    %803 = vmatpush1.bf16.msra.mxu0 0
    %804 = vmatprep.subr.bf16.mxu0 0
    %805 = vmatpush1.bf16.msra.mxu0 0
    %806 = vmatprep.subr.bf16.mxu0 0
    %807 = vmatpush1.bf16.msra.mxu0 0
    %808 = vmatprep.subr.bf16.mxu0 0
    %809 = vmatpush1.bf16.msra.mxu0 0
    %810 = vmatprep.subr.bf16.mxu0 0
    %811 = vmatpush1.bf16.msra.mxu0 0
    %812 = vmatprep.subr.bf16.mxu0 0
    %813 = vmatpush1.bf16.msra.mxu0 0
    %814 = vmatprep.subr.bf16.mxu0 0
    %815 = vmatpush1.bf16.msra.mxu0 0
    %816 = vmatprep.subr.bf16.mxu0 0
    %817 = vmatpush1.bf16.msra.mxu0 0
    %818 = vmatprep.mubr.bf16.mxu0 0
    %819 = vmatmul.mubr.bf16.gmra.mrb[0].mxu0 %v785
    %v820 = vpop.f32.mrb[0].mxu0
    %v821 = vadd.f32 %v308, %v820
    %v822 = vpop.f32.mrb[0].mxu0
    %v823 = vadd.f32 %v312, %v822
    %v824 = vpop.f32.mrb[0].mxu0
    %v825 = vpop.f32.mrb[0].mxu0
    %826 = vdwg.mxu0
    %827 = vmatprep.subr.bf16.mxu0 0
    %828 = vmatpush1.bf16.msra.mxu0 %v405
    %829 = vmatprep.subr.bf16.mxu0 0
    %830 = vmatpush1.bf16.msra.mxu0 %v408
    %831 = vmatprep.subr.bf16.mxu0 0
    %832 = vmatpush1.bf16.msra.mxu0 %v411
    %833 = vmatprep.subr.bf16.mxu0 0
    %834 = vmatpush1.bf16.msra.mxu0 %v414
    %835 = vmatprep.subr.bf16.mxu0 0
    %836 = vmatpush1.bf16.msra.mxu0 %v417
    %837 = vmatprep.subr.bf16.mxu0 0
    %838 = vmatpush1.bf16.msra.mxu0 %v420
    %839 = vmatprep.subr.bf16.mxu0 0
    %840 = vmatpush1.bf16.msra.mxu0 %v423
    %841 = vmatprep.subr.bf16.mxu0 0
    %842 = vmatpush1.bf16.msra.mxu0 %v426
    %843 = vmatprep.subr.bf16.mxu0 0
    %844 = vmatpush1.bf16.msra.mxu0 0
    %845 = vmatprep.subr.bf16.mxu0 0
    %846 = vmatpush1.bf16.msra.mxu0 0
    %847 = vmatprep.subr.bf16.mxu0 0
    %848 = vmatpush1.bf16.msra.mxu0 0
    %849 = vmatprep.subr.bf16.mxu0 0
    %850 = vmatpush1.bf16.msra.mxu0 0
    %851 = vmatprep.subr.bf16.mxu0 0
    %852 = vmatpush1.bf16.msra.mxu0 0
    %853 = vmatprep.subr.bf16.mxu0 0
    %854 = vmatpush1.bf16.msra.mxu0 0
    %855 = vmatprep.subr.bf16.mxu0 0
    %856 = vmatpush1.bf16.msra.mxu0 0
    %857 = vmatprep.subr.bf16.mxu0 0
    %858 = vmatpush1.bf16.msra.mxu0 0
    %859 = vmatprep.mubr.bf16.mxu0 0
    %860 = vmatmul.mubr.bf16.gmra.mrb[0].mxu0 %v785
    %v861 = vpop.f32.mrb[0].mxu0
    %v862 = vadd.f32 %v316, %v861
    %v863 = vpop.f32.mrb[0].mxu0
    %v864 = vpop.f32.mrb[0].mxu0
    %v865 = vpop.f32.mrb[0].mxu0
    %866 = vdwg.mxu0
    %v867 = vadd.f32 %v784, %v821
    %v868 = vxor.u32 %v867, 2147483648
    %v869 = vmul.f32 %v868, 1.442695
    %v870 = vpow.pop %v869
    %v871 = vadd.f32 %v870, 1.0
    %v872 = vrcp.pop %v871
    %v873 = vmul.f32 1.0, %v872
    %v875 = vrot.slane %v784, 2
    %v877 = vadd.f32 %v875, %v823
    %v878 = vxor.u32 %v877, 2147483648
    %v879 = vmul.f32 %v878, 1.442695
    %v880 = vpow.pop %v879
    %v881 = vadd.f32 %v880, 1.0
    %v882 = vrcp.pop %v881
    %v883 = vmul.f32 1.0, %v882
    %v884 = vmul.f32 %v873, %v862
    %v885 = vrot.slane %v784, 4
    %v887 = vadd.f32 %v885, %v884
    %v888 = vtanh.pop %v887
    %v889 = vsub.f32 1.0, %v883
    %v890 = vmul.f32 %v889, %v888
    %v891 = vmul.f32 %v883, %v780
    %v892 = vadd.f32 %v890, %v891
    %s893 = scalar_lea.vmem [#allocation3], 6
    %894 = vst [vmem:[%s893] sm:$0x3] %v892
    %s895 = scalar_lea.vmem [#allocation2], 24
    %v896 = vld [vmem:[%s895] sm:$0x3f]
    %v897 = vpack.c.bf16 %v892, %v892
    %898 = vmatprep.subr.bf16.mxu0 %v404
    %899 = vmatpush1.bf16.msra.mxu0 %v403
    %900 = vmatprep.subr.bf16.mxu0 %v407
    %901 = vmatpush1.bf16.msra.mxu0 %v406
    %902 = vmatprep.subr.bf16.mxu0 %v410
    %903 = vmatpush1.bf16.msra.mxu0 %v409
    %904 = vmatprep.subr.bf16.mxu0 %v413
    %905 = vmatpush1.bf16.msra.mxu0 %v412
    %906 = vmatprep.subr.bf16.mxu0 %v416
    %907 = vmatpush1.bf16.msra.mxu0 %v415
    %908 = vmatprep.subr.bf16.mxu0 %v419
    %909 = vmatpush1.bf16.msra.mxu0 %v418
    %910 = vmatprep.subr.bf16.mxu0 %v422
    %911 = vmatpush1.bf16.msra.mxu0 %v421
    %912 = vmatprep.subr.bf16.mxu0 %v425
    %913 = vmatpush1.bf16.msra.mxu0 %v424
    %914 = vmatprep.subr.bf16.mxu0 0
    %915 = vmatpush1.bf16.msra.mxu0 0
    %916 = vmatprep.subr.bf16.mxu0 0
    %917 = vmatpush1.bf16.msra.mxu0 0
    %918 = vmatprep.subr.bf16.mxu0 0
    %919 = vmatpush1.bf16.msra.mxu0 0
    %920 = vmatprep.subr.bf16.mxu0 0
    %921 = vmatpush1.bf16.msra.mxu0 0
    %922 = vmatprep.subr.bf16.mxu0 0
    %923 = vmatpush1.bf16.msra.mxu0 0
    %924 = vmatprep.subr.bf16.mxu0 0
    %925 = vmatpush1.bf16.msra.mxu0 0
    %926 = vmatprep.subr.bf16.mxu0 0
    %927 = vmatpush1.bf16.msra.mxu0 0
    %928 = vmatprep.subr.bf16.mxu0 0
    %929 = vmatpush1.bf16.msra.mxu0 0
    %930 = vmatprep.mubr.bf16.mxu0 0
    %931 = vmatmul.mubr.bf16.gmra.mrb[0].mxu0 %v897
    %v932 = vpop.f32.mrb[0].mxu0
    %v933 = vadd.f32 %v308, %v932
    %v934 = vpop.f32.mrb[0].mxu0
    %v935 = vadd.f32 %v312, %v934
    %v936 = vpop.f32.mrb[0].mxu0
    %v937 = vpop.f32.mrb[0].mxu0
    %938 = vdwg.mxu0
    %939 = vmatprep.subr.bf16.mxu0 0
    %940 = vmatpush1.bf16.msra.mxu0 %v405
    %941 = vmatprep.subr.bf16.mxu0 0
    %942 = vmatpush1.bf16.msra.mxu0 %v408
    %943 = vmatprep.subr.bf16.mxu0 0
    %944 = vmatpush1.bf16.msra.mxu0 %v411
    %945 = vmatprep.subr.bf16.mxu0 0
    %946 = vmatpush1.bf16.msra.mxu0 %v414
    %947 = vmatprep.subr.bf16.mxu0 0
    %948 = vmatpush1.bf16.msra.mxu0 %v417
    %949 = vmatprep.subr.bf16.mxu0 0
    %950 = vmatpush1.bf16.msra.mxu0 %v420
    %951 = vmatprep.subr.bf16.mxu0 0
    %952 = vmatpush1.bf16.msra.mxu0 %v423
    %953 = vmatprep.subr.bf16.mxu0 0
    %954 = vmatpush1.bf16.msra.mxu0 %v426
    %955 = vmatprep.subr.bf16.mxu0 0
    %956 = vmatpush1.bf16.msra.mxu0 0
    %957 = vmatprep.subr.bf16.mxu0 0
    %958 = vmatpush1.bf16.msra.mxu0 0
    %959 = vmatprep.subr.bf16.mxu0 0
    %960 = vmatpush1.bf16.msra.mxu0 0
    %961 = vmatprep.subr.bf16.mxu0 0
    %962 = vmatpush1.bf16.msra.mxu0 0
    %963 = vmatprep.subr.bf16.mxu0 0
    %964 = vmatpush1.bf16.msra.mxu0 0
    %965 = vmatprep.subr.bf16.mxu0 0
    %966 = vmatpush1.bf16.msra.mxu0 0
    %967 = vmatprep.subr.bf16.mxu0 0
    %968 = vmatpush1.bf16.msra.mxu0 0
    %969 = vmatprep.subr.bf16.mxu0 0
    %970 = vmatpush1.bf16.msra.mxu0 0
    %971 = vmatprep.mubr.bf16.mxu0 0
    %972 = vmatmul.mubr.bf16.gmra.mrb[0].mxu0 %v897
    %v973 = vpop.f32.mrb[0].mxu0
    %v974 = vadd.f32 %v316, %v973
    %v975 = vpop.f32.mrb[0].mxu0
    %v976 = vpop.f32.mrb[0].mxu0
    %v977 = vpop.f32.mrb[0].mxu0
    %978 = vdwg.mxu0
    %v979 = vadd.f32 %v896, %v933
    %v980 = vxor.u32 %v979, 2147483648
    %v981 = vmul.f32 %v980, 1.442695
    %v982 = vpow.pop %v981
    %v983 = vadd.f32 %v982, 1.0
    %v984 = vrcp.pop %v983
    %v985 = vmul.f32 1.0, %v984
    %v987 = vrot.slane %v896, 2
    %v989 = vadd.f32 %v987, %v935
    %v990 = vxor.u32 %v989, 2147483648
    %v991 = vmul.f32 %v990, 1.442695
    %v992 = vpow.pop %v991
    %v993 = vadd.f32 %v992, 1.0
    %v994 = vrcp.pop %v993
    %v995 = vmul.f32 1.0, %v994
    %v996 = vmul.f32 %v985, %v974
    %v997 = vrot.slane %v896, 4
    %v999 = vadd.f32 %v997, %v996
    %v1000 = vtanh.pop %v999
    %v1001 = vsub.f32 1.0, %v995
    %v1002 = vmul.f32 %v1001, %v1000
    %v1003 = vmul.f32 %v995, %v892
    %v1004 = vadd.f32 %v1002, %v1003
    %s1005 = scalar_lea.vmem [#allocation3], 8
    %1006 = vst [vmem:[%s1005] sm:$0x3] %v1004
    %s1007 = scalar_lea.vmem [#allocation2], 30
    %v1008 = vld [vmem:[%s1007] sm:$0x3f]
    %v1009 = vpack.c.bf16 %v1004, %v1004
    %1010 = vmatprep.subr.bf16.mxu0 %v404
    %1011 = vmatpush1.bf16.msra.mxu0 %v403
    %1012 = vmatprep.subr.bf16.mxu0 %v407
    %1013 = vmatpush1.bf16.msra.mxu0 %v406
    %1014 = vmatprep.subr.bf16.mxu0 %v410
    %1015 = vmatpush1.bf16.msra.mxu0 %v409
    %1016 = vmatprep.subr.bf16.mxu0 %v413
    %1017 = vmatpush1.bf16.msra.mxu0 %v412
    %1018 = vmatprep.subr.bf16.mxu0 %v416
    %1019 = vmatpush1.bf16.msra.mxu0 %v415
    %1020 = vmatprep.subr.bf16.mxu0 %v419
    %1021 = vmatpush1.bf16.msra.mxu0 %v418
    %1022 = vmatprep.subr.bf16.mxu0 %v422
    %1023 = vmatpush1.bf16.msra.mxu0 %v421
    %1024 = vmatprep.subr.bf16.mxu0 %v425
    %1025 = vmatpush1.bf16.msra.mxu0 %v424
    %1026 = vmatprep.subr.bf16.mxu0 0
    %1027 = vmatpush1.bf16.msra.mxu0 0
    %1028 = vmatprep.subr.bf16.mxu0 0
    %1029 = vmatpush1.bf16.msra.mxu0 0
    %1030 = vmatprep.subr.bf16.mxu0 0
    %1031 = vmatpush1.bf16.msra.mxu0 0
    %1032 = vmatprep.subr.bf16.mxu0 0
    %1033 = vmatpush1.bf16.msra.mxu0 0
    %1034 = vmatprep.subr.bf16.mxu0 0
    %1035 = vmatpush1.bf16.msra.mxu0 0
    %1036 = vmatprep.subr.bf16.mxu0 0
    %1037 = vmatpush1.bf16.msra.mxu0 0
    %1038 = vmatprep.subr.bf16.mxu0 0
    %1039 = vmatpush1.bf16.msra.mxu0 0
    %1040 = vmatprep.subr.bf16.mxu0 0
    %1041 = vmatpush1.bf16.msra.mxu0 0
    %1042 = vmatprep.mubr.bf16.mxu0 0
    %1043 = vmatmul.mubr.bf16.gmra.mrb[0].mxu0 %v1009
    %v1044 = vpop.f32.mrb[0].mxu0
    %v1045 = vadd.f32 %v308, %v1044
    %v1046 = vpop.f32.mrb[0].mxu0
    %v1047 = vadd.f32 %v312, %v1046
    %v1048 = vpop.f32.mrb[0].mxu0
    %v1049 = vpop.f32.mrb[0].mxu0
    %1050 = vdwg.mxu0
    %1051 = vmatprep.subr.bf16.mxu0 0
    %1052 = vmatpush1.bf16.msra.mxu0 %v405
    %1053 = vmatprep.subr.bf16.mxu0 0
    %1054 = vmatpush1.bf16.msra.mxu0 %v408
    %1055 = vmatprep.subr.bf16.mxu0 0
    %1056 = vmatpush1.bf16.msra.mxu0 %v411
    %1057 = vmatprep.subr.bf16.mxu0 0
    %1058 = vmatpush1.bf16.msra.mxu0 %v414
    %1059 = vmatprep.subr.bf16.mxu0 0
    %1060 = vmatpush1.bf16.msra.mxu0 %v417
    %1061 = vmatprep.subr.bf16.mxu0 0
    %1062 = vmatpush1.bf16.msra.mxu0 %v420
    %1063 = vmatprep.subr.bf16.mxu0 0
    %1064 = vmatpush1.bf16.msra.mxu0 %v423
    %1065 = vmatprep.subr.bf16.mxu0 0
    %1066 = vmatpush1.bf16.msra.mxu0 %v426
    %1067 = vmatprep.subr.bf16.mxu0 0
    %1068 = vmatpush1.bf16.msra.mxu0 0
    %1069 = vmatprep.subr.bf16.mxu0 0
    %1070 = vmatpush1.bf16.msra.mxu0 0
    %1071 = vmatprep.subr.bf16.mxu0 0
    %1072 = vmatpush1.bf16.msra.mxu0 0
    %1073 = vmatprep.subr.bf16.mxu0 0
    %1074 = vmatpush1.bf16.msra.mxu0 0
    %1075 = vmatprep.subr.bf16.mxu0 0
    %1076 = vmatpush1.bf16.msra.mxu0 0
    %1077 = vmatprep.subr.bf16.mxu0 0
    %1078 = vmatpush1.bf16.msra.mxu0 0
    %1079 = vmatprep.subr.bf16.mxu0 0
    %1080 = vmatpush1.bf16.msra.mxu0 0
    %1081 = vmatprep.subr.bf16.mxu0 0
    %1082 = vmatpush1.bf16.msra.mxu0 0
    %1083 = vmatprep.mubr.bf16.mxu0 0
    %1084 = vmatmul.mubr.bf16.gmra.mrb[0].mxu0 %v1009
    %v1085 = vpop.f32.mrb[0].mxu0
    %v1086 = vadd.f32 %v316, %v1085
    %v1087 = vpop.f32.mrb[0].mxu0
    %v1088 = vpop.f32.mrb[0].mxu0
    %v1089 = vpop.f32.mrb[0].mxu0
    %1090 = vdwg.mxu0
    %v1091 = vadd.f32 %v1008, %v1045
    %v1092 = vxor.u32 %v1091, 2147483648
    %v1093 = vmul.f32 %v1092, 1.442695
    %v1094 = vpow.pop %v1093
    %v1095 = vadd.f32 %v1094, 1.0
    %v1096 = vrcp.pop %v1095
    %v1097 = vmul.f32 1.0, %v1096
    %v1099 = vrot.slane %v1008, 2
    %v1101 = vadd.f32 %v1099, %v1047
    %v1102 = vxor.u32 %v1101, 2147483648
    %v1103 = vmul.f32 %v1102, 1.442695
    %v1104 = vpow.pop %v1103
    %v1105 = vadd.f32 %v1104, 1.0
    %v1106 = vrcp.pop %v1105
    %v1107 = vmul.f32 1.0, %v1106
    %v1108 = vmul.f32 %v1097, %v1086
    %v1109 = vrot.slane %v1008, 4
    %v1111 = vadd.f32 %v1109, %v1108
    %v1112 = vtanh.pop %v1111
    %v1113 = vsub.f32 1.0, %v1107
    %v1114 = vmul.f32 %v1113, %v1112
    %v1115 = vmul.f32 %v1107, %v1004
    %v1116 = vadd.f32 %v1114, %v1115
    %s1117 = scalar_lea.vmem [#allocation3], 10
    %1118 = vst [vmem:[%s1117] sm:$0x3] %v1116
    %s1119 = scalar_lea.vmem [#allocation2], 36
    %v1120 = vld [vmem:[%s1119] sm:$0x3f]
    %v1121 = vpack.c.bf16 %v1116, %v1116
    %1122 = vmatprep.subr.bf16.mxu0 %v404
    %1123 = vmatpush1.bf16.msra.mxu0 %v403
    %1124 = vmatprep.subr.bf16.mxu0 %v407
    %1125 = vmatpush1.bf16.msra.mxu0 %v406
    %1126 = vmatprep.subr.bf16.mxu0 %v410
    %1127 = vmatpush1.bf16.msra.mxu0 %v409
    %1128 = vmatprep.subr.bf16.mxu0 %v413
    %1129 = vmatpush1.bf16.msra.mxu0 %v412
    %1130 = vmatprep.subr.bf16.mxu0 %v416
    %1131 = vmatpush1.bf16.msra.mxu0 %v415
    %1132 = vmatprep.subr.bf16.mxu0 %v419
    %1133 = vmatpush1.bf16.msra.mxu0 %v418
    %1134 = vmatprep.subr.bf16.mxu0 %v422
    %1135 = vmatpush1.bf16.msra.mxu0 %v421
    %1136 = vmatprep.subr.bf16.mxu0 %v425
    %1137 = vmatpush1.bf16.msra.mxu0 %v424
    %1138 = vmatprep.subr.bf16.mxu0 0
    %1139 = vmatpush1.bf16.msra.mxu0 0
    %1140 = vmatprep.subr.bf16.mxu0 0
    %1141 = vmatpush1.bf16.msra.mxu0 0
    %1142 = vmatprep.subr.bf16.mxu0 0
    %1143 = vmatpush1.bf16.msra.mxu0 0
    %1144 = vmatprep.subr.bf16.mxu0 0
    %1145 = vmatpush1.bf16.msra.mxu0 0
    %1146 = vmatprep.subr.bf16.mxu0 0
    %1147 = vmatpush1.bf16.msra.mxu0 0
    %1148 = vmatprep.subr.bf16.mxu0 0
    %1149 = vmatpush1.bf16.msra.mxu0 0
    %1150 = vmatprep.subr.bf16.mxu0 0
    %1151 = vmatpush1.bf16.msra.mxu0 0
    %1152 = vmatprep.subr.bf16.mxu0 0
    %1153 = vmatpush1.bf16.msra.mxu0 0
    %1154 = vmatprep.mubr.bf16.mxu0 0
    %1155 = vmatmul.mubr.bf16.gmra.mrb[0].mxu0 %v1121
    %v1156 = vpop.f32.mrb[0].mxu0
    %v1157 = vadd.f32 %v308, %v1156
    %v1158 = vpop.f32.mrb[0].mxu0
    %v1159 = vadd.f32 %v312, %v1158
    %v1160 = vpop.f32.mrb[0].mxu0
    %v1161 = vpop.f32.mrb[0].mxu0
    %1162 = vdwg.mxu0
    %1163 = vmatprep.subr.bf16.mxu0 0
    %1164 = vmatpush1.bf16.msra.mxu0 %v405
    %1165 = vmatprep.subr.bf16.mxu0 0
    %1166 = vmatpush1.bf16.msra.mxu0 %v408
    %1167 = vmatprep.subr.bf16.mxu0 0
    %1168 = vmatpush1.bf16.msra.mxu0 %v411
    %1169 = vmatprep.subr.bf16.mxu0 0
    %1170 = vmatpush1.bf16.msra.mxu0 %v414
    %1171 = vmatprep.subr.bf16.mxu0 0
    %1172 = vmatpush1.bf16.msra.mxu0 %v417
    %1173 = vmatprep.subr.bf16.mxu0 0
    %1174 = vmatpush1.bf16.msra.mxu0 %v420
    %1175 = vmatprep.subr.bf16.mxu0 0
    %1176 = vmatpush1.bf16.msra.mxu0 %v423
    %1177 = vmatprep.subr.bf16.mxu0 0
    %1178 = vmatpush1.bf16.msra.mxu0 %v426
    %1179 = vmatprep.subr.bf16.mxu0 0
    %1180 = vmatpush1.bf16.msra.mxu0 0
    %1181 = vmatprep.subr.bf16.mxu0 0
    %1182 = vmatpush1.bf16.msra.mxu0 0
    %1183 = vmatprep.subr.bf16.mxu0 0
    %1184 = vmatpush1.bf16.msra.mxu0 0
    %1185 = vmatprep.subr.bf16.mxu0 0
    %1186 = vmatpush1.bf16.msra.mxu0 0
    %1187 = vmatprep.subr.bf16.mxu0 0
    %1188 = vmatpush1.bf16.msra.mxu0 0
    %1189 = vmatprep.subr.bf16.mxu0 0
    %1190 = vmatpush1.bf16.msra.mxu0 0
    %1191 = vmatprep.subr.bf16.mxu0 0
    %1192 = vmatpush1.bf16.msra.mxu0 0
    %1193 = vmatprep.subr.bf16.mxu0 0
    %1194 = vmatpush1.bf16.msra.mxu0 0
    %1195 = vmatprep.mubr.bf16.mxu0 0
    %1196 = vmatmul.mubr.bf16.gmra.mrb[0].mxu0 %v1121
    %v1197 = vpop.f32.mrb[0].mxu0
    %v1198 = vadd.f32 %v316, %v1197
    %v1199 = vpop.f32.mrb[0].mxu0
    %v1200 = vpop.f32.mrb[0].mxu0
    %v1201 = vpop.f32.mrb[0].mxu0
    %1202 = vdwg.mxu0
    %v1203 = vadd.f32 %v1120, %v1157
    %v1204 = vxor.u32 %v1203, 2147483648
    %v1205 = vmul.f32 %v1204, 1.442695
    %v1206 = vpow.pop %v1205
    %v1207 = vadd.f32 %v1206, 1.0
    %v1208 = vrcp.pop %v1207
    %v1209 = vmul.f32 1.0, %v1208
    %v1211 = vrot.slane %v1120, 2
    %v1213 = vadd.f32 %v1211, %v1159
    %v1214 = vxor.u32 %v1213, 2147483648
    %v1215 = vmul.f32 %v1214, 1.442695
    %v1216 = vpow.pop %v1215
    %v1217 = vadd.f32 %v1216, 1.0
    %v1218 = vrcp.pop %v1217
    %v1219 = vmul.f32 1.0, %v1218
    %v1220 = vmul.f32 %v1209, %v1198
    %v1221 = vrot.slane %v1120, 4
    %v1223 = vadd.f32 %v1221, %v1220
    %v1224 = vtanh.pop %v1223
    %v1225 = vsub.f32 1.0, %v1219
    %v1226 = vmul.f32 %v1225, %v1224
    %v1227 = vmul.f32 %v1219, %v1116
    %v1228 = vadd.f32 %v1226, %v1227
    %s1229 = scalar_lea.vmem [#allocation3], 12
    %1230 = vst [vmem:[%s1229] sm:$0x3] %v1228
    %s1231 = scalar_lea.vmem [#allocation2], 42
    %v1232 = vld [vmem:[%s1231] sm:$0x3f]
    %v1233 = vpack.c.bf16 %v1228, %v1228
    %1234 = vmatprep.subr.bf16.mxu0 %v404
    %1235 = vmatpush1.bf16.msra.mxu0 %v403
    %1236 = vmatprep.subr.bf16.mxu0 %v407
    %1237 = vmatpush1.bf16.msra.mxu0 %v406
    %1238 = vmatprep.subr.bf16.mxu0 %v410
    %1239 = vmatpush1.bf16.msra.mxu0 %v409
    %1240 = vmatprep.subr.bf16.mxu0 %v413
    %1241 = vmatpush1.bf16.msra.mxu0 %v412
    %1242 = vmatprep.subr.bf16.mxu0 %v416
    %1243 = vmatpush1.bf16.msra.mxu0 %v415
    %1244 = vmatprep.subr.bf16.mxu0 %v419
    %1245 = vmatpush1.bf16.msra.mxu0 %v418
    %1246 = vmatprep.subr.bf16.mxu0 %v422
    %1247 = vmatpush1.bf16.msra.mxu0 %v421
    %1248 = vmatprep.subr.bf16.mxu0 %v425
    %1249 = vmatpush1.bf16.msra.mxu0 %v424
    %1250 = vmatprep.subr.bf16.mxu0 0
    %1251 = vmatpush1.bf16.msra.mxu0 0
    %1252 = vmatprep.subr.bf16.mxu0 0
    %1253 = vmatpush1.bf16.msra.mxu0 0
    %1254 = vmatprep.subr.bf16.mxu0 0
    %1255 = vmatpush1.bf16.msra.mxu0 0
    %1256 = vmatprep.subr.bf16.mxu0 0
    %1257 = vmatpush1.bf16.msra.mxu0 0
    %1258 = vmatprep.subr.bf16.mxu0 0
    %1259 = vmatpush1.bf16.msra.mxu0 0
    %1260 = vmatprep.subr.bf16.mxu0 0
    %1261 = vmatpush1.bf16.msra.mxu0 0
    %1262 = vmatprep.subr.bf16.mxu0 0
    %1263 = vmatpush1.bf16.msra.mxu0 0
    %1264 = vmatprep.subr.bf16.mxu0 0
    %1265 = vmatpush1.bf16.msra.mxu0 0
    %1266 = vmatprep.mubr.bf16.mxu0 0
    %1267 = vmatmul.mubr.bf16.gmra.mrb[0].mxu0 %v1233
    %v1268 = vpop.f32.mrb[0].mxu0
    %v1269 = vadd.f32 %v308, %v1268
    %v1270 = vpop.f32.mrb[0].mxu0
    %v1271 = vadd.f32 %v312, %v1270
    %v1272 = vpop.f32.mrb[0].mxu0
    %v1273 = vpop.f32.mrb[0].mxu0
    %1274 = vdwg.mxu0
    %1275 = vmatprep.subr.bf16.mxu0 0
    %1276 = vmatpush1.bf16.msra.mxu0 %v405
    %1277 = vmatprep.subr.bf16.mxu0 0
    %1278 = vmatpush1.bf16.msra.mxu0 %v408
    %1279 = vmatprep.subr.bf16.mxu0 0
    %1280 = vmatpush1.bf16.msra.mxu0 %v411
    %1281 = vmatprep.subr.bf16.mxu0 0
    %1282 = vmatpush1.bf16.msra.mxu0 %v414
    %1283 = vmatprep.subr.bf16.mxu0 0
    %1284 = vmatpush1.bf16.msra.mxu0 %v417
    %1285 = vmatprep.subr.bf16.mxu0 0
    %1286 = vmatpush1.bf16.msra.mxu0 %v420
    %1287 = vmatprep.subr.bf16.mxu0 0
    %1288 = vmatpush1.bf16.msra.mxu0 %v423
    %1289 = vmatprep.subr.bf16.mxu0 0
    %1290 = vmatpush1.bf16.msra.mxu0 %v426
    %1291 = vmatprep.subr.bf16.mxu0 0
    %1292 = vmatpush1.bf16.msra.mxu0 0
    %1293 = vmatprep.subr.bf16.mxu0 0
    %1294 = vmatpush1.bf16.msra.mxu0 0
    %1295 = vmatprep.subr.bf16.mxu0 0
    %1296 = vmatpush1.bf16.msra.mxu0 0
    %1297 = vmatprep.subr.bf16.mxu0 0
    %1298 = vmatpush1.bf16.msra.mxu0 0
    %1299 = vmatprep.subr.bf16.mxu0 0
    %1300 = vmatpush1.bf16.msra.mxu0 0
    %1301 = vmatprep.subr.bf16.mxu0 0
    %1302 = vmatpush1.bf16.msra.mxu0 0
    %1303 = vmatprep.subr.bf16.mxu0 0
    %1304 = vmatpush1.bf16.msra.mxu0 0
    %1305 = vmatprep.subr.bf16.mxu0 0
    %1306 = vmatpush1.bf16.msra.mxu0 0
    %1307 = vmatprep.mubr.bf16.mxu0 0
    %1308 = vmatmul.mubr.bf16.gmra.mrb[0].mxu0 %v1233
    %v1309 = vpop.f32.mrb[0].mxu0
    %v1310 = vadd.f32 %v316, %v1309
    %v1311 = vpop.f32.mrb[0].mxu0
    %v1312 = vpop.f32.mrb[0].mxu0
    %v1313 = vpop.f32.mrb[0].mxu0
    %1314 = vdwg.mxu0
    %v1315 = vadd.f32 %v1232, %v1269
    %v1316 = vxor.u32 %v1315, 2147483648
    %v1317 = vmul.f32 %v1316, 1.442695
    %v1318 = vpow.pop %v1317
    %v1319 = vadd.f32 %v1318, 1.0
    %v1320 = vrcp.pop %v1319
    %v1321 = vmul.f32 1.0, %v1320
    %v1323 = vrot.slane %v1232, 2
    %v1325 = vadd.f32 %v1323, %v1271
    %v1326 = vxor.u32 %v1325, 2147483648
    %v1327 = vmul.f32 %v1326, 1.442695
    %v1328 = vpow.pop %v1327
    %v1329 = vadd.f32 %v1328, 1.0
    %v1330 = vrcp.pop %v1329
    %v1331 = vmul.f32 1.0, %v1330
    %v1332 = vmul.f32 %v1321, %v1310
    %v1333 = vrot.slane %v1232, 4
    %v1335 = vadd.f32 %v1333, %v1332
    %v1336 = vtanh.pop %v1335
    %v1337 = vsub.f32 1.0, %v1331
    %v1338 = vmul.f32 %v1337, %v1336
    %v1339 = vmul.f32 %v1331, %v1228
    %v1340 = vadd.f32 %v1338, %v1339
    %s1341 = scalar_lea.vmem [#allocation3], 14
    %1342 = vst [vmem:[%s1341] sm:$0x3] %v1340
    %v1343 = vld [vmem:[#allocation3] sm:$0x3]
    %v1344 = vld [vmem:[#allocation3 + $0x2] sm:$0x3]
    %v1345 = vld [vmem:[#allocation3 + $0x4] sm:$0x3]
    %v1346 = vld [vmem:[#allocation3 + $0x6] sm:$0x3]
    %v1347 = vld [vmem:[#allocation3 + $0x8] sm:$0x3]
    %v1348 = vld [vmem:[#allocation3 + $0xa] sm:$0x3]
    %v1349 = vld [vmem:[#allocation3 + $0xc] sm:$0x3]
    %v1350 = vld [vmem:[#allocation3 + $0xe] sm:$0x3]
    %v1359 = vcombine.low %v1343, %v1344
    %v1360 = vcombine.low %v1345, %v1346
    %v1362 = vunpack.c.l.s4 1983009808
    %v1363 = vunpack.c.0.s8 %v1362
    %v1364 = vlaneseq
    %v1365 = vshrl.u32 %v1364, 7
    %v1366 = vsub.s32 %v1363, %v1365
    %v1367 = vrot.slane %v1359, %v1366
    %v1369 = vunpack.c.l.s4 1983009808
    %v1370 = vunpack.c.0.s8 %v1369
    %v1371 = vlaneseq
    %v1372 = vshrl.u32 %v1371, 7
    %v1373 = vsub.s32 %v1370, %v1372
    %v1374 = vrot.slane %v1360, %v1373
    %v1375 = vcombine.low %v1367, %v1374
    %v1376 = vcombine.low %v1347, %v1348
    %v1377 = vcombine.low %v1349, %v1350
    %v1379 = vunpack.c.l.s4 1983009808
    %v1380 = vunpack.c.0.s8 %v1379
    %v1381 = vlaneseq
    %v1382 = vshrl.u32 %v1381, 7
    %v1383 = vsub.s32 %v1380, %v1382
    %v1384 = vrot.slane %v1376, %v1383
    %v1386 = vunpack.c.l.s4 1983009808
    %v1387 = vunpack.c.0.s8 %v1386
    %v1388 = vlaneseq
    %v1389 = vshrl.u32 %v1388, 7
    %v1390 = vsub.s32 %v1387, %v1389
    %v1391 = vrot.slane %v1377, %v1390
    %v1392 = vcombine.low %v1384, %v1391
    %v1395 = vpack.c.bf16 %v1392, %v1375
    %v1396 = vld [vmem:[%s6] sm:$0xf]
    %v1397 = vld [vmem:[%s6 + $0x4] sm:$0xf]
    %v1398 = vld [vmem:[%s6 + $0x8] sm:$0xf]
    %v1399 = vld [vmem:[%s6 + $0xc] sm:$0xf]
    %v1400 = vld [vmem:[%s6 + $0x10] sm:$0xf]
    %v1401 = vld [vmem:[%s6 + $0x14] sm:$0xf]
    %v1402 = vld [vmem:[%s6 + $0x18] sm:$0xf]
    %v1403 = vld [vmem:[%s6 + $0x1c] sm:$0xf]
    %v1404 = vld [vmem:[%s6 + $0x20] sm:$0xf]
    %v1405 = vld [vmem:[%s6 + $0x24] sm:$0xf]
    %v1406 = vld [vmem:[%s6 + $0x28] sm:$0xf]
    %v1407 = vld [vmem:[%s6 + $0x2c] sm:$0xf]
    %v1408 = vld [vmem:[%s6 + $0x30] sm:$0xf]
    %v1409 = vld [vmem:[%s6 + $0x34] sm:$0xf]
    %v1410 = vld [vmem:[%s6 + $0x38] sm:$0xf]
    %v1411 = vld [vmem:[%s6 + $0x3c] sm:$0xf]
    %v1412 = vld [vmem:[%s7] sm:$0x1]
    %v1414 = vlaneseq
    %v1415 = vshrl.u32 %v1414, 7
    %v1416 = vsub.s32 0, %v1415
    %v1417 = vrot.slane %v1412, %v1416
    %v1435 = vunpack.c.l.b16 %v1396
    %v1436 = vunpack.c.l.b16 %v1397
    %v1437 = vunpack.c.l.b16 %v1398
    %v1438 = vunpack.c.l.b16 %v1399
    %v1439 = vunpack.c.l.b16 %v1400
    %v1440 = vunpack.c.l.b16 %v1401
    %v1441 = vunpack.c.l.b16 %v1402
    %v1442 = vunpack.c.l.b16 %v1403
    %v1443 = vunpack.c.l.b16 %v1404
    %v1444 = vunpack.c.l.b16 %v1405
    %v1445 = vunpack.c.l.b16 %v1406
    %v1446 = vunpack.c.l.b16 %v1407
    %v1447 = vunpack.c.l.b16 %v1408
    %v1448 = vunpack.c.l.b16 %v1409
    %v1449 = vunpack.c.l.b16 %v1410
    %v1450 = vunpack.c.l.b16 %v1411
    %v1451 = vpack.c.b16 %v1436, %v1435
    %v1452 = vpack.c.b16 %v1438, %v1437
    %v1453 = vpack.c.b16 %v1440, %v1439
    %v1454 = vpack.c.b16 %v1442, %v1441
    %v1455 = vpack.c.b16 %v1444, %v1443
    %v1456 = vpack.c.b16 %v1446, %v1445
    %v1457 = vpack.c.b16 %v1448, %v1447
    %v1458 = vpack.c.b16 %v1450, %v1449
    %1467 = vmatprep.subr.bf16.mxu0 0
    %1468 = vmatpush1.bf16.msra.mxu0 %v1451
    %1469 = vmatprep.subr.bf16.mxu0 0
    %1470 = vmatpush1.bf16.msra.mxu0 %v1452
    %1471 = vmatprep.subr.bf16.mxu0 0
    %1472 = vmatpush1.bf16.msra.mxu0 %v1453
    %1473 = vmatprep.subr.bf16.mxu0 0
    %1474 = vmatpush1.bf16.msra.mxu0 %v1454
    %1475 = vmatprep.subr.bf16.mxu0 0
    %1476 = vmatpush1.bf16.msra.mxu0 %v1455
    %1477 = vmatprep.subr.bf16.mxu0 0
    %1478 = vmatpush1.bf16.msra.mxu0 %v1456
    %1479 = vmatprep.subr.bf16.mxu0 0
    %1480 = vmatpush1.bf16.msra.mxu0 %v1457
    %1481 = vmatprep.subr.bf16.mxu0 0
    %1482 = vmatpush1.bf16.msra.mxu0 %v1458
    %1483 = vmatprep.subr.bf16.mxu0 0
    %1484 = vmatpush1.bf16.msra.mxu0 0
    %1485 = vmatprep.subr.bf16.mxu0 0
    %1486 = vmatpush1.bf16.msra.mxu0 0
    %1487 = vmatprep.subr.bf16.mxu0 0
    %1488 = vmatpush1.bf16.msra.mxu0 0
    %1489 = vmatprep.subr.bf16.mxu0 0
    %1490 = vmatpush1.bf16.msra.mxu0 0
    %1491 = vmatprep.subr.bf16.mxu0 0
    %1492 = vmatpush1.bf16.msra.mxu0 0
    %1493 = vmatprep.subr.bf16.mxu0 0
    %1494 = vmatpush1.bf16.msra.mxu0 0
    %1495 = vmatprep.subr.bf16.mxu0 0
    %1496 = vmatpush1.bf16.msra.mxu0 0
    %1497 = vmatprep.subr.bf16.mxu0 0
    %1498 = vmatpush1.bf16.msra.mxu0 0
    %1499 = vmatprep.mubr.bf16.mxu0 0
    %1500 = vmatmul.mubr.bf16.gmra.mrb[0].mxu0 %v1395
    %v1501 = vpop.f32.mrb[0].mxu0
    %v1502 = vadd.f32 %v1417, %v1501
    %v1503 = vpop.f32.mrb[0].mxu0
    %v1504 = vpop.f32.mrb[0].mxu0
    %v1505 = vadd.f32 %v1417, %v1504
    %v1506 = vpop.f32.mrb[0].mxu0
    %1507 = vdwg.mxu0
    %v1508 = vxor.u32 %v1502, 2147483648
    %v1509 = vxor.u32 %v1505, 2147483648
    %v1510 = vmul.f32 %v1508, 1.442695
    %v1511 = vpow.pop %v1510
    %v1512 = vmul.f32 %v1509, 1.442695
    %v1513 = vpow.pop %v1512
    %v1514 = vadd.f32 %v1511, 1.0
    %v1515 = vadd.f32 %v1513, 1.0
    %v1516 = vrcp.pop %v1514
    %v1517 = vmul.f32 1.0, %v1516
    %v1518 = vrcp.pop %v1515
    %v1519 = vmul.f32 1.0, %v1518
    %v1522 = vcombine.high %v1517, %v1517
    %v1524 = vunpack.c.l.s4 1983009808
    %v1525 = vunpack.c.0.s8 %v1524
    %v1526 = vlaneseq
    %v1527 = vshrl.u32 %v1526, 7
    %v1528 = vsub.s32 %v1525, %v1527
    %v1529 = vrot.slane %v1517, %v1528
    %v1531 = vunpack.c.l.s4 1983009808
    %v1532 = vunpack.c.0.s8 %v1531
    %v1533 = vlaneseq
    %v1534 = vshrl.u32 %v1533, 7
    %v1535 = vsub.s32 %v1532, %v1534
    %v1536 = vrot.slane %v1522, %v1535
    %v1537 = vcombine.high %v1529, %v1529
    %v1538 = vcombine.high %v1536, %v1536
    %v1539 = vcombine.high %v1519, %v1519
    %v1541 = vunpack.c.l.s4 1983009808
    %v1542 = vunpack.c.0.s8 %v1541
    %v1543 = vlaneseq
    %v1544 = vshrl.u32 %v1543, 7
    %v1545 = vsub.s32 %v1542, %v1544
    %v1546 = vrot.slane %v1519, %v1545
    %v1548 = vunpack.c.l.s4 1983009808
    %v1549 = vunpack.c.0.s8 %v1548
    %v1550 = vlaneseq
    %v1551 = vshrl.u32 %v1550, 7
    %v1552 = vsub.s32 %v1549, %v1551
    %v1553 = vrot.slane %v1539, %v1552
    %v1554 = vcombine.high %v1546, %v1546
    %v1555 = vcombine.high %v1553, %v1553
    %vm1564 = vcmask 17408
    %1565 = vst.msk [vmem:[%s8] sm:$0x3] %vm1564, %v1529
    %1566 = vst.msk [vmem:[%s8 + $0x2] sm:$0x3] %vm1564, %v1537
    %1567 = vst.msk [vmem:[%s8 + $0x4] sm:$0x3] %vm1564, %v1536
    %1568 = vst.msk [vmem:[%s8 + $0x6] sm:$0x3] %vm1564, %v1538
    %1569 = vst.msk [vmem:[%s8 + $0x8] sm:$0x3] %vm1564, %v1546
    %1570 = vst.msk [vmem:[%s8 + $0xa] sm:$0x3] %vm1564, %v1554
    %1571 = vst.msk [vmem:[%s8 + $0xc] sm:$0x3] %vm1564, %v1553
    %1572 = vst.msk [vmem:[%s8 + $0xe] sm:$0x3] %vm1564, %v1555
    %vm1573 = vcmask 254976
    %1574 = vst.msk [vmem:[#allocation7] sm:$0x3] %vm1573, %v1340
    // Predicated region
    $region38: #{tpu_custom_call.1} parent=1 // pred_check
      _
    $region39: #{tpu_custom_call.1} parent=1 // pred_check_branch
      %1576 = sbr.rel (0) target = $region41
    $region40: #{tpu_custom_call.1} parent=1 // pred_region
      _
    $region41: #{tpu_custom_call.1} parent=1 // pred_fallthru
      _
    // Predicated region
    $region42: #{tpu_custom_call.1} parent=1 // pred_check
      _
    $region43: #{tpu_custom_call.1} parent=1 // pred_check_branch
      %1578 = sbr.rel (0) target = $region45
    $region44: #{tpu_custom_call.1} parent=1 // pred_region
      %s1580 = ssub.s32 32, 32
      %1581 = vsyncadd [#allocation6], %s1580
      %s1583 = sshll.u32 [#allocation7], 4
      %s1584 = int_to_ptr.vmem [resolvable:$true] %s1583
      %1586 = dma.vmem_to_hbm [thread:$0]  %s1584, 32, %s9, [#allocation6]
    $region45: #{tpu_custom_call.1} parent=1 // pred_fallthru
      _
    // Predicated region
    $region46: #{tpu_custom_call.1} parent=1 // pred_check
      _
    $region47: #{tpu_custom_call.1} parent=1 // pred_check_branch
      %1588 = sbr.rel (0) target = $region49
    $region48: #{tpu_custom_call.1} parent=1 // pred_region
      _
    $region49: #{tpu_custom_call.1} parent=1 // pred_fallthru
      _
    // Predicated region
    $region50: #{tpu_custom_call.1} parent=1 // pred_check
      _
    $region51: #{tpu_custom_call.1} parent=1 // pred_check_branch
      %1590 = sbr.rel (0) target = $region53
    $region52: #{tpu_custom_call.1} parent=1 // pred_region
      %1591 = dma.done [#allocation6], 32
    $region53: #{tpu_custom_call.1} parent=1 // pred_fallthru
      _
    %1592 = vsyncpa [#allocation5], 1
    %1593 = vsyncpa [#allocation6], 1

</llo_original>
